<compile_context>
chip_gen: v7x
topology: tpu7x:2x2x1
jax: 0.10.0
libtpu: 0.0.40
codegen_flags: <defaults>
</compile_context>

<pallas_src>
import math
from functools import partial

import jax
import jax.numpy as jnp
from jax.experimental import pallas as pl
from jax.experimental.pallas import tpu as pltpu


# --------------------------------------------------------------------------- #
# Kernel
# --------------------------------------------------------------------------- #
def _cross_attn_kernel(tgt_ref, mem_ref, qpos_ref, kpos_ref,
                       wqkv_ref, bqkv_ref, wo_ref, bo_ref,
                       gamma_ref, beta_ref, o_ref,
                       *, nhead, tb, rows_batch_major, matmul_dtype):
    """One batch-block of CrossAttentionLayer.forward_post.

    tgt_ref/qpos_ref : (Mq, E)   target rows of this block (Mq = tb * L)
    mem_ref/kpos_ref : (Mk, E)   memory rows of this block (Mk = tb * S)
    wqkv_ref         : (3, E, E) pre-transposed Q/K/V weights (Q pre-scaled)
    bqkv_ref         : (3, 1, E) Q/K/V biases (Q pre-scaled)
    wo_ref           : (E, E)    out_proj.weight^T
    bo/gamma/beta    : (1, E)
    o_ref            : (Mq, E)
    """
    f32 = jnp.float32
    H = nhead
    Mq, E = tgt_ref.shape
    Mk = mem_ref.shape[0]
    Dh = E // H
    L = Mq // tb
    S = Mk // tb
    cast = (lambda x: x) if matmul_dtype is None else (lambda x: x.astype(matmul_dtype))

    tgt = tgt_ref[...].astype(f32)
    q_in = tgt + qpos_ref[...].astype(f32)          # query = tgt + query_pos
    mem = mem_ref[...].astype(f32)
    k_in = mem + kpos_ref[...].astype(f32)          # key   = memory + pos

    # --- full-width Q/K/V projections: three (M,E)@(E,E) MXU ops
    #     (attention scale already folded into the Q weight / bias) ---
    q = jnp.dot(cast(q_in), cast(wqkv_ref[0]), preferred_element_type=f32) + bqkv_ref[0]
    k = jnp.dot(cast(k_in), cast(wqkv_ref[1]), preferred_element_type=f32) + bqkv_ref[1]
    v = jnp.dot(cast(mem), cast(wqkv_ref[2]), preferred_element_type=f32) + bqkv_ref[2]

    # --- head split (head-major columns -> leading batch axis); static lane
    #     slices + stack, unrolled over the small H ---
    def split_heads(x):
        return jnp.stack([x[:, h * Dh:(h + 1) * Dh] for h in range(H)], axis=0)

    qh = split_heads(q)                              # (H, Mq, Dh)
    kh = split_heads(k)                              # (H, Mk, Dh)
    vh = split_heads(v)                              # (H, Mk, Dh)

    # --- attention scores + in-kernel block-diagonal cross-batch mask ---
    s = jnp.einsum("hqd,hkd->hqk", cast(qh), cast(kh),
                   preferred_element_type=f32)       # (H, Mq, Mk)
    if tb > 1:
        iq = jax.lax.broadcasted_iota(jnp.int32, (1, Mq, Mk), 1)
        ik = jax.lax.broadcasted_iota(jnp.int32, (1, Mq, Mk), 2)
        if rows_batch_major:                         # rows grouped per batch elem
            same = (iq // L) == (ik // S)
        else:                                        # batch is the minor row index
            same = (iq % tb) == (ik % tb)
        s = jnp.where(same, s, -1e30)

    # --- softmax (f32).  Exact reciprocal keeps parity with torch.softmax at
    #     1e-4; approx=True would move the divide onto the idle EUP slot. ---
    s = s - jnp.max(s, axis=-1, keepdims=True)
    p = jnp.exp(s)
    p = p * pl.reciprocal(jnp.sum(p, axis=-1, keepdims=True), approx=False)

    o = jnp.einsum("hqk,hkd->hqd", cast(p), cast(vh),
                   preferred_element_type=f32)       # (H, Mq, Dh)

    # --- head merge folded into ONE (M,E)@(E,E) output projection ---
    o_m = jnp.concatenate([o[h] for h in range(H)], axis=-1)        # (Mq, E)
    y = jnp.dot(cast(o_m), cast(wo_ref[...]), preferred_element_type=f32) + bo_ref[...]

    # --- residual (dropout p=0 -> identity) + LayerNorm(d_model) ---
    y = tgt + y
    mean = jnp.mean(y, axis=-1, keepdims=True)
    var = jnp.mean((y - mean) * (y - mean), axis=-1, keepdims=True)
    yn = (y - mean) * jax.lax.rsqrt(var + 1e-5)
    o_ref[...] = (yn * gamma_ref[...] + beta_ref[...]).astype(o_ref.dtype)


# --------------------------------------------------------------------------- #
# Wrapper-side helpers
# --------------------------------------------------------------------------- #
def _vmem_capacity_bytes():
    try:
        return int(pltpu.get_tpu_info().vmem_capacity_bytes)
    except Exception:
        return 64 * 1024 * 1024          # conservative (v7x-sized) fallback


def _num_tensorcores():
    """Heuristic: chips whose device shards a 'parallel' grid axis across 2 TCs."""
    try:
        kind = jax.devices()[0].device_kind.lower()
    except Exception:
        return 1
    return 2 if ("v4" in kind or "v5p" in kind or "v7" in kind) else 1


def _kernel_vmem_bytes(tb, L, S, E, H):
    """Rough per-step VMEM model, including the quadratic score/prob tensors."""
    mq, mk = tb * L, tb * S
    f32 = 4
    act = 2 * f32 * 2 * (mq + mk) * E            # 4 activation blocks, double-buffered
    out = 2 * f32 * mq * E                       # output block
    const = f32 * (4 * E * E + 8 * E)            # single-buffered parameters
    scratch = f32 * (3 * H * mq * mk + 6 * (mq + mk) * E)   # scores/probs + q/k/v temps
    return act + out + const + scratch


def _pick_batch_block(N, L, S, E, H, vmem_budget):
    # TB = N needs no wrapper transpose; smaller TB must keep row blocks 8-aligned.
    cands = [N] + [d for d in range(1, N) if N % d == 0
                   and (d * L) % 8 == 0 and (d * S) % 8 == 0]
    fit = [d for d in cands if _kernel_vmem_bytes(d, L, S, E, H) <= vmem_budget]
    pool = fit if fit else [min(cands)]
    if _num_tensorcores() >= 2:
        even = [d for d in pool if (N // d) % 2 == 0]
        if even:
            return max(even)                     # even grid -> both TCs get work
    return max(pool)                             # single TC -> fewest grid steps


def _const_spec(shape):
    """BlockSpec for never-changing parameter blocks (single-buffered if possible)."""
    index_map = lambda g, n=len(shape): (0,) * n
    buffered = getattr(pl, "Buffered", None)
    if buffered is not None:
        try:
            return pl.BlockSpec(shape, index_map, pipeline_mode=buffered(1))
        except TypeError:
            pass
    return pl.BlockSpec(shape, index_map)


def prepare_cross_attention_params(params):
    """One-time re-layout of PyTorch-native parameters into contraction-ready
    form (hoisted out of the per-call path)."""
    E = params["out_proj_w"].shape[0]
    H = int(params["nhead"])
    Dh = E // H
    scale = 1.0 / math.sqrt(Dh)
    f32 = jnp.float32
    W = params["in_proj_w"].astype(f32)                       # (3E, E)
    b = params["in_proj_b"].astype(f32).reshape(3, E)
    wq_t = W[:E].T * scale                                    # x @ wq_t == (x @ Wq^T)/sqrt(Dh)
    wk_t = W[E:2 * E].T
    wv_t = W[2 * E:].T
    return {
        "nhead": H,
        "wqkv_t": jnp.stack([wq_t, wk_t, wv_t], axis=0),      # (3, E, E)
        "bqkv": jnp.stack([b[0] * scale, b[1], b[2]], axis=0).reshape(3, 1, E),
        "wo_t": params["out_proj_w"].astype(f32).T,           # (E, E)
        "bo": params["out_proj_b"].reshape(1, E).astype(f32),
        "gamma": params["ln_weight"].reshape(1, E).astype(f32),
        "beta": params["ln_bias"].reshape(1, E).astype(f32),
    }


def cross_attention_layer(tgt, memory, query_pos, pos, prepared,
                          *, batch_block=None, matmul_dtype=None):
    """CrossAttentionLayer.forward (normalize_before=False, dropout=0).

    tgt/query_pos: (L, N, E); memory/pos: (S, N, E) -- PyTorch MHA layout.
    `prepared` comes from prepare_cross_attention_params().
    `matmul_dtype=jnp.bfloat16` enables the fast MXU path on v6e/v7x (validate
    tolerances before use); default keeps f32 parity with the reference.
    """
    L, N, E = tgt.shape
    S = memory.shape[0]
    H = int(prepared["nhead"])
    assert E % H == 0

    vmem_cap = _vmem_capacity_bytes()
    TB = _pick_batch_block(N, L, S, E, H, vmem_cap // 2) if batch_block is None else batch_block
    assert N % TB == 0, "batch block must divide the batch size"
    G = N // TB

    if G == 1:
        # No wrapper transposes: free row-major reshapes, batch is the minor
        # row index (row = l*N + n); the kernel's mask isolates batch elements.
        tgt_f, qpos_f = tgt.reshape(L * N, E), query_pos.reshape(L * N, E)
        mem_f, kpos_f = memory.reshape(S * N, E), pos.reshape(S * N, E)
        rows_batch_major = False
    else:
        # Batch-first so each grid step sees contiguous whole batch elements.
        tgt_f = jnp.transpose(tgt, (1, 0, 2)).reshape(N * L, E)
        qpos_f = jnp.transpose(query_pos, (1, 0, 2)).reshape(N * L, E)
        mem_f = jnp.transpose(memory, (1, 0, 2)).reshape(N * S, E)
        kpos_f = jnp.transpose(pos, (1, 0, 2)).reshape(N * S, E)
        rows_batch_major = True

    kernel = partial(_cross_attn_kernel, nhead=H, tb=TB,
                     rows_batch_major=rows_batch_major, matmul_dtype=matmul_dtype)

    out_f = pl.pallas_call(
        kernel,
        out_shape=jax.ShapeDtypeStruct((N * L, E), tgt.dtype),
        grid=(G,),
        in_specs=[
            pl.BlockSpec((TB * L, E), lambda g: (g, 0)),   # tgt rows
            pl.BlockSpec((TB * S, E), lambda g: (g, 0)),   # memory rows
            pl.BlockSpec((TB * L, E), lambda g: (g, 0)),   # query_pos rows
            pl.BlockSpec((TB * S, E), lambda g: (g, 0)),   # pos rows
            _const_spec((3, E, E)),                        # QKV weights (pre-transposed)
            _const_spec((3, 1, E)),                        # QKV biases
            _const_spec((E, E)),                           # out_proj weight^T
            _const_spec((1, E)),                           # out_proj bias
            _const_spec((1, E)),                           # LayerNorm weight
            _const_spec((1, E)),                           # LayerNorm bias
        ],
        out_specs=pl.BlockSpec((TB * L, E), lambda g: (g, 0)),
        compiler_params=pltpu.CompilerParams(
            dimension_semantics=("parallel",),             # independent batch blocks
            vmem_limit_bytes=int(min(max(vmem_cap // 2, 32 * 1024 * 1024),
                                     100 * 1024 * 1024)),
        ),
    )(tgt_f, mem_f, qpos_f, kpos_f,
      prepared["wqkv_t"], prepared["bqkv"], prepared["wo_t"],
      prepared["bo"], prepared["gamma"], prepared["beta"])

    if G == 1:
        return out_f.reshape(L, N, E)                      # free reshape back
    return jnp.transpose(out_f.reshape(N, L, E), (1, 0, 2))


# --------------------------------------------------------------------------- #
# Pure-JAX reference & self-test
# --------------------------------------------------------------------------- #
def _reference(tgt, memory, query_pos, pos, params):
    """Pure-JAX reference of CrossAttentionLayer.forward_post (dropout=0)."""
    L, N, E = tgt.shape
    S = memory.shape[0]
    H = params["nhead"]
    Dh = E // H
    W = params["in_proj_w"]
    b = params["in_proj_b"]
    q_in = tgt + query_pos
    k_in = memory + pos
    q = jnp.einsum("lne,fe->lnf", q_in, W[0:E]) + b[0:E]
    k = jnp.einsum("sne,fe->snf", k_in, W[E:2 * E]) + b[E:2 * E]
    v = jnp.einsum("sne,fe->snf", memory, W[2 * E:]) + b[2 * E:]
    q = q.reshape(L, N, H, Dh) / math.sqrt(Dh)
    k = k.reshape(S, N, H, Dh)
    v = v.reshape(S, N, H, Dh)
    s = jnp.einsum("lnhd,snhd->nhls", q, k)
    p = jax.nn.softmax(s, axis=-1)
    o = jnp.einsum("nhls,snhd->lnhd", p, v).reshape(L, N, E)
    o = jnp.einsum("lne,fe->lnf", o, params["out_proj_w"]) + params["out_proj_b"]
    y = tgt + o
    mean = jnp.mean(y, axis=-1, keepdims=True)
    var = jnp.mean((y - mean) ** 2, axis=-1, keepdims=True)
    yn = (y - mean) * jax.lax.rsqrt(var + 1e-5)
    return yn * params["ln_weight"] + params["ln_bias"]


def _xavier_uniform(key, shape):
    fan_out, fan_in = shape
    bound = math.sqrt(6.0 / (fan_in + fan_out))
    return jax.random.uniform(key, shape, jnp.float32, -bound, bound)


if __name__ == "__main__":
    d_model, nhead = 32, 4
    L, S, N = 8, 16, 4          # target len, memory len, batch

    key = jax.random.PRNGKey(0)
    kw1, kb1, kw2, kb2, kg, kb3, kt, km, kqp, kp = jax.random.split(key, 10)

    # PyTorch-native parameter shapes (module init zeroes biases; small random
    # values used here so the bias paths are exercised).
    params = {
        "nhead": nhead,
        "in_proj_w": _xavier_uniform(kw1, (3 * d_model, d_model)),
        "in_proj_b": 0.1 * jax.random.normal(kb1, (3 * d_model,), jnp.float32),
        "out_proj_w": _xavier_uniform(kw2, (d_model, d_model)),
        "out_proj_b": 0.1 * jax.random.normal(kb2, (d_model,), jnp.float32),
        "ln_weight": 1.0 + 0.1 * jax.random.normal(kg, (d_model,), jnp.float32),
        "ln_bias": 0.1 * jax.random.normal(kb3, (d_model,), jnp.float32),
    }
    prepared = prepare_cross_attention_params(params)   # hoisted, one time

    tgt = jax.random.normal(kt, (L, N, d_model), jnp.float32)
    memory = jax.random.normal(km, (S, N, d_model), jnp.float32)
    query_pos = jax.random.normal(kqp, (L, N, d_model), jnp.float32)
    pos = jax.random.normal(kp, (S, N, d_model), jnp.float32)

    ref = _reference(tgt, memory, query_pos, pos, params)

    # Default path (auto-picked batch block; G=1 / transpose-free on 1-TC chips).
    out = cross_attention_layer(tgt, memory, query_pos, pos, prepared)
    out = jax.block_until_ready(out)
    assert out.shape == (L, N, d_model)
    err = float(jnp.max(jnp.abs(out - ref)))
    assert jnp.allclose(out, ref, atol=1e-4, rtol=1e-4), (
        f"mismatch vs reference (max |err| = {err:e})")

    # Also exercise the multi-step (batch-major, block-diagonal-mask) path.
    out2 = cross_attention_layer(tgt, memory, query_pos, pos, prepared, batch_block=2)
    out2 = jax.block_until_ready(out2)
    err2 = float(jnp.max(jnp.abs(out2 - ref)))
    assert jnp.allclose(out2, ref, atol=1e-4, rtol=1e-4), (
        f"mismatch vs reference on blocked path (max |err| = {err2:e})")

    print("KERNEL_OK")
</pallas_src>

<mosaic_0001>
module attributes {stable_mosaic.version = 11 : i64} {
  func.func @_cross_attn_kernel(%arg0: i32, %arg1: memref<32x32xf32, #tpu.memory_space<vmem>>, %arg2: memref<64x32xf32, #tpu.memory_space<vmem>>, %arg3: memref<32x32xf32, #tpu.memory_space<vmem>>, %arg4: memref<64x32xf32, #tpu.memory_space<vmem>>, %arg5: memref<3x32x32xf32, #tpu.memory_space<vmem>>, %arg6: memref<3x1x32xf32, #tpu.memory_space<vmem>>, %arg7: memref<32x32xf32, #tpu.memory_space<vmem>>, %arg8: memref<1x32xf32, #tpu.memory_space<vmem>>, %arg9: memref<1x32xf32, #tpu.memory_space<vmem>>, %arg10: memref<1x32xf32, #tpu.memory_space<vmem>>, %arg11: memref<32x32xf32, #tpu.memory_space<vmem>>) attributes {dimension_semantics = [#tpu.dimension_semantics<parallel>], iteration_bounds = array<i64: 1>, scalar_prefetch = 0 : i64, scratch_operands = 0 : i64, tpu.core_type = #tpu.core_type<tc>, window_params = [{transform_indices = @transform_0, window_bounds = array<i64: 32, 32>}, {transform_indices = @transform_1, window_bounds = array<i64: 64, 32>}, {transform_indices = @transform_2, window_bounds = array<i64: 32, 32>}, {transform_indices = @transform_3, window_bounds = array<i64: 64, 32>}, {pipeline_mode = #tpu.pipeline_mode<synchronous>, transform_indices = @transform_4, window_bounds = array<i64: 3, 32, 32>}, {pipeline_mode = #tpu.pipeline_mode<synchronous>, transform_indices = @transform_5, window_bounds = array<i64: 3, 1, 32>}, {pipeline_mode = #tpu.pipeline_mode<synchronous>, transform_indices = @transform_6, window_bounds = array<i64: 32, 32>}, {pipeline_mode = #tpu.pipeline_mode<synchronous>, transform_indices = @transform_7, window_bounds = array<i64: 1, 32>}, {pipeline_mode = #tpu.pipeline_mode<synchronous>, transform_indices = @transform_8, window_bounds = array<i64: 1, 32>}, {pipeline_mode = #tpu.pipeline_mode<synchronous>, transform_indices = @transform_9, window_bounds = array<i64: 1, 32>}, {transform_indices = @transform_10, window_bounds = array<i64: 32, 32>}]} {
    %c0 = arith.constant 0 : index
    %c0_0 = arith.constant 0 : index
    %0 = vector.load %arg1[%c0, %c0_0] : memref<32x32xf32, #tpu.memory_space<vmem>>, vector<32x32xf32>
    %c0_1 = arith.constant 0 : index
    %c0_2 = arith.constant 0 : index
    %1 = vector.load %arg3[%c0_1, %c0_2] : memref<32x32xf32, #tpu.memory_space<vmem>>, vector<32x32xf32>
    %2 = arith.addf %0, %1 : vector<32x32xf32>
    %c0_3 = arith.constant 0 : index
    %c0_4 = arith.constant 0 : index
    %3 = vector.load %arg2[%c0_3, %c0_4] : memref<64x32xf32, #tpu.memory_space<vmem>>, vector<64x32xf32>
    %c0_5 = arith.constant 0 : index
    %c0_6 = arith.constant 0 : index
    %4 = vector.load %arg4[%c0_5, %c0_6] : memref<64x32xf32, #tpu.memory_space<vmem>>, vector<64x32xf32>
    %5 = arith.addf %3, %4 : vector<64x32xf32>
    %c0_7 = arith.constant 0 : index
    %c0_8 = arith.constant 0 : index
    %c0_9 = arith.constant 0 : index
    %6 = vector.load %arg5[%c0_7, %c0_8, %c0_9] : memref<3x32x32xf32, #tpu.memory_space<vmem>>, vector<1x32x32xf32>
    %7 = vector.shape_cast %6 : vector<1x32x32xf32> to vector<32x32xf32>
    %cst = arith.constant dense<0.000000e+00> : vector<32x32xf32>
    %8 = tpu.matmul %2, %7, %cst {dimension_numbers = #tpu.dot_dimension_numbers<[1], [0], [0], [1], [0, 0, 1, 1], [], []>} : vector<32x32xf32>, vector<32x32xf32>, vector<32x32xf32> -> vector<32x32xf32>
    %c0_10 = arith.constant 0 : index
    %c0_11 = arith.constant 0 : index
    %c0_12 = arith.constant 0 : index
    %9 = vector.load %arg6[%c0_10, %c0_11, %c0_12] : memref<3x1x32xf32, #tpu.memory_space<vmem>>, vector<1x1x32xf32>
    %10 = vector.shape_cast %9 : vector<1x1x32xf32> to vector<1x32xf32>
    %11 = vector.broadcast %10 : vector<1x32xf32> to vector<32x32xf32>
    %12 = arith.addf %8, %11 : vector<32x32xf32>
    %c1 = arith.constant 1 : index
    %c0_13 = arith.constant 0 : index
    %c0_14 = arith.constant 0 : index
    %13 = vector.load %arg5[%c1, %c0_13, %c0_14] : memref<3x32x32xf32, #tpu.memory_space<vmem>>, vector<1x32x32xf32>
    %14 = vector.shape_cast %13 : vector<1x32x32xf32> to vector<32x32xf32>
    %cst_15 = arith.constant dense<0.000000e+00> : vector<64x32xf32>
    %15 = tpu.matmul %5, %14, %cst_15 {dimension_numbers = #tpu.dot_dimension_numbers<[1], [0], [0], [1], [0, 0, 1, 1], [], []>} : vector<64x32xf32>, vector<32x32xf32>, vector<64x32xf32> -> vector<64x32xf32>
    %c1_16 = arith.constant 1 : index
    %c0_17 = arith.constant 0 : index
    %c0_18 = arith.constant 0 : index
    %16 = vector.load %arg6[%c1_16, %c0_17, %c0_18] : memref<3x1x32xf32, #tpu.memory_space<vmem>>, vector<1x1x32xf32>
    %17 = vector.shape_cast %16 : vector<1x1x32xf32> to vector<1x32xf32>
    %18 = vector.broadcast %17 : vector<1x32xf32> to vector<64x32xf32>
    %19 = arith.addf %15, %18 : vector<64x32xf32>
    %c2 = arith.constant 2 : index
    %c0_19 = arith.constant 0 : index
    %c0_20 = arith.constant 0 : index
    %20 = vector.load %arg5[%c2, %c0_19, %c0_20] : memref<3x32x32xf32, #tpu.memory_space<vmem>>, vector<1x32x32xf32>
    %21 = vector.shape_cast %20 : vector<1x32x32xf32> to vector<32x32xf32>
    %cst_21 = arith.constant dense<0.000000e+00> : vector<64x32xf32>
    %22 = tpu.matmul %3, %21, %cst_21 {dimension_numbers = #tpu.dot_dimension_numbers<[1], [0], [0], [1], [0, 0, 1, 1], [], []>} : vector<64x32xf32>, vector<32x32xf32>, vector<64x32xf32> -> vector<64x32xf32>
    %c2_22 = arith.constant 2 : index
    %c0_23 = arith.constant 0 : index
    %c0_24 = arith.constant 0 : index
    %23 = vector.load %arg6[%c2_22, %c0_23, %c0_24] : memref<3x1x32xf32, #tpu.memory_space<vmem>>, vector<1x1x32xf32>
    %24 = vector.shape_cast %23 : vector<1x1x32xf32> to vector<1x32xf32>
    %25 = vector.broadcast %24 : vector<1x32xf32> to vector<64x32xf32>
    %26 = arith.addf %22, %25 : vector<64x32xf32>
    %27 = vector.extract_strided_slice %12 {offsets = [0, 0], sizes = [32, 8], strides = [1, 1]} : vector<32x32xf32> to vector<32x8xf32>
    %28 = vector.extract_strided_slice %12 {offsets = [0, 8], sizes = [32, 8], strides = [1, 1]} : vector<32x32xf32> to vector<32x8xf32>
    %29 = vector.extract_strided_slice %12 {offsets = [0, 16], sizes = [32, 8], strides = [1, 1]} : vector<32x32xf32> to vector<32x8xf32>
    %30 = vector.extract_strided_slice %12 {offsets = [0, 24], sizes = [32, 8], strides = [1, 1]} : vector<32x32xf32> to vector<32x8xf32>
    %31 = vector.shape_cast %27 : vector<32x8xf32> to vector<1x32x8xf32>
    %32 = vector.shape_cast %28 : vector<32x8xf32> to vector<1x32x8xf32>
    %33 = vector.shape_cast %29 : vector<32x8xf32> to vector<1x32x8xf32>
    %34 = vector.shape_cast %30 : vector<32x8xf32> to vector<1x32x8xf32>
    %35 = tpu.concatenate %31, %32, %33, %34 in 0 : vector<1x32x8xf32>, vector<1x32x8xf32>, vector<1x32x8xf32>, vector<1x32x8xf32> -> vector<4x32x8xf32>
    %36 = vector.extract_strided_slice %19 {offsets = [0, 0], sizes = [64, 8], strides = [1, 1]} : vector<64x32xf32> to vector<64x8xf32>
    %37 = vector.extract_strided_slice %19 {offsets = [0, 8], sizes = [64, 8], strides = [1, 1]} : vector<64x32xf32> to vector<64x8xf32>
    %38 = vector.extract_strided_slice %19 {offsets = [0, 16], sizes = [64, 8], strides = [1, 1]} : vector<64x32xf32> to vector<64x8xf32>
    %39 = vector.extract_strided_slice %19 {offsets = [0, 24], sizes = [64, 8], strides = [1, 1]} : vector<64x32xf32> to vector<64x8xf32>
    %40 = vector.shape_cast %36 : vector<64x8xf32> to vector<1x64x8xf32>
    %41 = vector.shape_cast %37 : vector<64x8xf32> to vector<1x64x8xf32>
    %42 = vector.shape_cast %38 : vector<64x8xf32> to vector<1x64x8xf32>
    %43 = vector.shape_cast %39 : vector<64x8xf32> to vector<1x64x8xf32>
    %44 = tpu.concatenate %40, %41, %42, %43 in 0 : vector<1x64x8xf32>, vector<1x64x8xf32>, vector<1x64x8xf32>, vector<1x64x8xf32> -> vector<4x64x8xf32>
    %45 = vector.extract_strided_slice %26 {offsets = [0, 0], sizes = [64, 8], strides = [1, 1]} : vector<64x32xf32> to vector<64x8xf32>
    %46 = vector.extract_strided_slice %26 {offsets = [0, 8], sizes = [64, 8], strides = [1, 1]} : vector<64x32xf32> to vector<64x8xf32>
    %47 = vector.extract_strided_slice %26 {offsets = [0, 16], sizes = [64, 8], strides = [1, 1]} : vector<64x32xf32> to vector<64x8xf32>
    %48 = vector.extract_strided_slice %26 {offsets = [0, 24], sizes = [64, 8], strides = [1, 1]} : vector<64x32xf32> to vector<64x8xf32>
    %49 = vector.shape_cast %45 : vector<64x8xf32> to vector<1x64x8xf32>
    %50 = vector.shape_cast %46 : vector<64x8xf32> to vector<1x64x8xf32>
    %51 = vector.shape_cast %47 : vector<64x8xf32> to vector<1x64x8xf32>
    %52 = vector.shape_cast %48 : vector<64x8xf32> to vector<1x64x8xf32>
    %53 = tpu.concatenate %49, %50, %51, %52 in 0 : vector<1x64x8xf32>, vector<1x64x8xf32>, vector<1x64x8xf32>, vector<1x64x8xf32> -> vector<4x64x8xf32>
    "tpu.trace_start"() <{level = 10 : i32, message = "hqd,hkd->hqk"}> : () -> ()
    %cst_25 = arith.constant dense<0.000000e+00> : vector<4x32x64xf32>
    %54 = tpu.matmul %35, %44, %cst_25 {dimension_numbers = #tpu.dot_dimension_numbers<[2], [2], [1], [1], [0, 0, 0, 1, 1, 1], [0], [0]>} : vector<4x32x8xf32>, vector<4x64x8xf32>, vector<4x32x64xf32> -> vector<4x32x64xf32>
    "tpu.trace_stop"() : () -> ()
    %55 = tpu.iota {dimensions = array<i32: 1>} : vector<1x32x64xi32>
    %56 = tpu.iota {dimensions = array<i32: 2>} : vector<1x32x64xi32>
    %c4_i32 = arith.constant 4 : i32
    %c0_i32 = arith.constant 0 : i32
    %57 = arith.cmpi eq, %c4_i32, %c0_i32 : i32
    %c1_i32 = arith.constant 1 : i32
    %58 = arith.select %57, %c1_i32, %c4_i32 : i32
    %59 = vector.broadcast %58 : i32 to vector<1x32x64xi32>
    %60 = arith.remsi %55, %59 : vector<1x32x64xi32>
    %c0_i32_26 = arith.constant 0 : i32
    %61 = vector.broadcast %c0_i32_26 : i32 to vector<1x32x64xi32>
    %62 = arith.cmpi ne, %60, %61 : vector<1x32x64xi32>
    %c0_i32_27 = arith.constant 0 : i32
    %63 = vector.broadcast %c0_i32_27 : i32 to vector<1x32x64xi32>
    %64 = arith.cmpi slt, %60, %63 : vector<1x32x64xi32>
    %c0_i32_28 = arith.constant 0 : i32
    %65 = arith.cmpi slt, %58, %c0_i32_28 : i32
    %66 = vector.broadcast %65 : i1 to vector<1x32x64xi1>
    %67 = vector.broadcast %66 : vector<1x32x64xi1> to vector<1x32x64xi1>
    %68 = arith.xori %64, %67 : vector<1x32x64xi1>
    %69 = arith.andi %68, %62 : vector<1x32x64xi1>
    %70 = vector.broadcast %58 : i32 to vector<1x32x64xi32>
    %71 = arith.addi %60, %70 : vector<1x32x64xi32>
    %72 = arith.select %69, %71, %60 : vector<1x32x64xi1>, vector<1x32x64xi32>
    %c4_i32_29 = arith.constant 4 : i32
    %c0_i32_30 = arith.constant 0 : i32
    %73 = arith.cmpi eq, %c4_i32_29, %c0_i32_30 : i32
    %c1_i32_31 = arith.constant 1 : i32
    %74 = arith.select %73, %c1_i32_31, %c4_i32_29 : i32
    %75 = vector.broadcast %74 : i32 to vector<1x32x64xi32>
    %76 = arith.remsi %56, %75 : vector<1x32x64xi32>
    %c0_i32_32 = arith.constant 0 : i32
    %77 = vector.broadcast %c0_i32_32 : i32 to vector<1x32x64xi32>
    %78 = arith.cmpi ne, %76, %77 : vector<1x32x64xi32>
    %c0_i32_33 = arith.constant 0 : i32
    %79 = vector.broadcast %c0_i32_33 : i32 to vector<1x32x64xi32>
    %80 = arith.cmpi slt, %76, %79 : vector<1x32x64xi32>
    %c0_i32_34 = arith.constant 0 : i32
    %81 = arith.cmpi slt, %74, %c0_i32_34 : i32
    %82 = vector.broadcast %81 : i1 to vector<1x32x64xi1>
    %83 = vector.broadcast %82 : vector<1x32x64xi1> to vector<1x32x64xi1>
    %84 = arith.xori %80, %83 : vector<1x32x64xi1>
    %85 = arith.andi %84, %78 : vector<1x32x64xi1>
    %86 = vector.broadcast %74 : i32 to vector<1x32x64xi32>
    %87 = arith.addi %76, %86 : vector<1x32x64xi32>
    %88 = arith.select %85, %87, %76 : vector<1x32x64xi1>, vector<1x32x64xi32>
    %89 = arith.cmpi eq, %72, %88 : vector<1x32x64xi32>
    %cst_35 = arith.constant -1.000000e+30 : f32
    %90 = vector.shape_cast %89 : vector<1x32x64xi1> to vector<1x32x64xi1>
    %91 = vector.broadcast %90 : vector<1x32x64xi1> to vector<4x32x64xi1>
    %92 = vector.broadcast %cst_35 : f32 to vector<4x32x64xf32>
    %93 = arith.select %91, %54, %92 : vector<4x32x64xi1>, vector<4x32x64xf32>
    %cst_36 = arith.constant dense<0xFF800000> : vector<4x32xf32>
    %94 = vector.multi_reduction <maximumf>, %93, %cst_36 [2] : vector<4x32x64xf32> to vector<4x32xf32>
    %95 = vector.shape_cast %94 : vector<4x32xf32> to vector<4x32x1xf32>
    %96 = vector.broadcast %95 : vector<4x32x1xf32> to vector<4x32x64xf32>
    %97 = arith.subf %93, %96 : vector<4x32x64xf32>
    %98 = math.exp %97 : vector<4x32x64xf32>
    %cst_37 = arith.constant dense<0.000000e+00> : vector<4x32xf32>
    %99 = vector.multi_reduction <add>, %98, %cst_37 [2] : vector<4x32x64xf32> to vector<4x32xf32>
    %100 = vector.shape_cast %99 : vector<4x32xf32> to vector<4x32x1xf32>
    %101 = tpu.reciprocal %100 : vector<4x32x1xf32> -> vector<4x32x1xf32>
    %102 = vector.broadcast %101 : vector<4x32x1xf32> to vector<4x32x64xf32>
    %103 = arith.mulf %98, %102 : vector<4x32x64xf32>
    "tpu.trace_start"() <{level = 10 : i32, message = "hqk,hkd->hqd"}> : () -> ()
    %cst_38 = arith.constant dense<0.000000e+00> : vector<4x32x8xf32>
    %104 = tpu.matmul %103, %53, %cst_38 {dimension_numbers = #tpu.dot_dimension_numbers<[2], [1], [1], [2], [0, 0, 0, 1, 1, 2], [0], [0]>} : vector<4x32x64xf32>, vector<4x64x8xf32>, vector<4x32x8xf32> -> vector<4x32x8xf32>
    "tpu.trace_stop"() : () -> ()
    %105 = vector.extract_strided_slice %104 {offsets = [0, 0, 0], sizes = [1, 32, 8], strides = [1, 1, 1]} : vector<4x32x8xf32> to vector<1x32x8xf32>
    %106 = vector.shape_cast %105 : vector<1x32x8xf32> to vector<32x8xf32>
    %107 = vector.extract_strided_slice %104 {offsets = [1, 0, 0], sizes = [1, 32, 8], strides = [1, 1, 1]} : vector<4x32x8xf32> to vector<1x32x8xf32>
    %108 = vector.shape_cast %107 : vector<1x32x8xf32> to vector<32x8xf32>
    %109 = vector.extract_strided_slice %104 {offsets = [2, 0, 0], sizes = [1, 32, 8], strides = [1, 1, 1]} : vector<4x32x8xf32> to vector<1x32x8xf32>
    %110 = vector.shape_cast %109 : vector<1x32x8xf32> to vector<32x8xf32>
    %111 = vector.extract_strided_slice %104 {offsets = [3, 0, 0], sizes = [1, 32, 8], strides = [1, 1, 1]} : vector<4x32x8xf32> to vector<1x32x8xf32>
    %112 = vector.shape_cast %111 : vector<1x32x8xf32> to vector<32x8xf32>
    %113 = tpu.concatenate %106, %108, %110, %112 in 1 : vector<32x8xf32>, vector<32x8xf32>, vector<32x8xf32>, vector<32x8xf32> -> vector<32x32xf32>
    %c0_39 = arith.constant 0 : index
    %c0_40 = arith.constant 0 : index
    %114 = vector.load %arg7[%c0_39, %c0_40] : memref<32x32xf32, #tpu.memory_space<vmem>>, vector<32x32xf32>
    %cst_41 = arith.constant dense<0.000000e+00> : vector<32x32xf32>
    %115 = tpu.matmul %113, %114, %cst_41 {dimension_numbers = #tpu.dot_dimension_numbers<[1], [0], [0], [1], [0, 0, 1, 1], [], []>} : vector<32x32xf32>, vector<32x32xf32>, vector<32x32xf32> -> vector<32x32xf32>
    %c0_42 = arith.constant 0 : index
    %c0_43 = arith.constant 0 : index
    %116 = vector.load %arg8[%c0_42, %c0_43] : memref<1x32xf32, #tpu.memory_space<vmem>>, vector<1x32xf32>
    %117 = vector.broadcast %116 : vector<1x32xf32> to vector<32x32xf32>
    %118 = arith.addf %115, %117 : vector<32x32xf32>
    %119 = arith.addf %0, %118 : vector<32x32xf32>
    %cst_44 = arith.constant dense<0.000000e+00> : vector<32xf32>
    %120 = vector.multi_reduction <add>, %119, %cst_44 [1] : vector<32x32xf32> to vector<32xf32>
    %121 = vector.shape_cast %120 : vector<32xf32> to vector<32x1xf32>
    %cst_45 = arith.constant 3.200000e+01 : f32
    %122 = vector.broadcast %cst_45 : f32 to vector<32x1xf32>
    %123 = arith.divf %121, %122 : vector<32x1xf32>
    %124 = vector.broadcast %123 : vector<32x1xf32> to vector<32x32xf32>
    %125 = arith.subf %119, %124 : vector<32x32xf32>
    %126 = vector.broadcast %123 : vector<32x1xf32> to vector<32x32xf32>
    %127 = arith.subf %119, %126 : vector<32x32xf32>
    %128 = arith.mulf %125, %127 : vector<32x32xf32>
    %cst_46 = arith.constant dense<0.000000e+00> : vector<32xf32>
    %129 = vector.multi_reduction <add>, %128, %cst_46 [1] : vector<32x32xf32> to vector<32xf32>
    %130 = vector.shape_cast %129 : vector<32xf32> to vector<32x1xf32>
    %cst_47 = arith.constant 3.200000e+01 : f32
    %131 = vector.broadcast %cst_47 : f32 to vector<32x1xf32>
    %132 = arith.divf %130, %131 : vector<32x1xf32>
    %133 = vector.broadcast %123 : vector<32x1xf32> to vector<32x32xf32>
    %134 = arith.subf %119, %133 : vector<32x32xf32>
    %cst_48 = arith.constant 9.99999974E-6 : f32
    %135 = vector.broadcast %cst_48 : f32 to vector<32x1xf32>
    %136 = arith.addf %132, %135 : vector<32x1xf32>
    %137 = math.rsqrt %136 : vector<32x1xf32>
    %138 = vector.broadcast %137 : vector<32x1xf32> to vector<32x32xf32>
    %139 = arith.mulf %134, %138 : vector<32x32xf32>
    %c0_49 = arith.constant 0 : index
    %c0_50 = arith.constant 0 : index
    %140 = vector.load %arg9[%c0_49, %c0_50] : memref<1x32xf32, #tpu.memory_space<vmem>>, vector<1x32xf32>
    %141 = vector.broadcast %140 : vector<1x32xf32> to vector<32x32xf32>
    %142 = arith.mulf %139, %141 : vector<32x32xf32>
    %c0_51 = arith.constant 0 : index
    %c0_52 = arith.constant 0 : index
    %143 = vector.load %arg10[%c0_51, %c0_52] : memref<1x32xf32, #tpu.memory_space<vmem>>, vector<1x32xf32>
    %144 = vector.broadcast %143 : vector<1x32xf32> to vector<32x32xf32>
    %145 = arith.addf %142, %144 : vector<32x32xf32>
    %c0_53 = arith.constant 0 : index
    %c0_54 = arith.constant 0 : index
    %146 = vector.load %arg11[%c0_53, %c0_54] : memref<32x32xf32, #tpu.memory_space<vmem>>, vector<32x32xf32>
    tpu.vector_store %arg11[%c0_53, %c0_54], %145 {strides = array<i32>} : memref<32x32xf32, #tpu.memory_space<vmem>>, vector<32x32xf32>,
    return
  }
  func.func @transform_0(%arg0: i32) -> (i32, i32) {
    %c0_i32 = arith.constant 0 : i32
    %c0_i32_0 = arith.constant 0 : i32
    return %arg0, %c0_i32 : i32, i32
  }
  func.func @transform_1(%arg0: i32) -> (i32, i32) {
    %c0_i32 = arith.constant 0 : i32
    %c0_i32_0 = arith.constant 0 : i32
    return %arg0, %c0_i32 : i32, i32
  }
  func.func @transform_2(%arg0: i32) -> (i32, i32) {
    %c0_i32 = arith.constant 0 : i32
    %c0_i32_0 = arith.constant 0 : i32
    return %arg0, %c0_i32 : i32, i32
  }
  func.func @transform_3(%arg0: i32) -> (i32, i32) {
    %c0_i32 = arith.constant 0 : i32
    %c0_i32_0 = arith.constant 0 : i32
    return %arg0, %c0_i32 : i32, i32
  }
  func.func @transform_4(%arg0: i32) -> (i32, i32, i32) {
    %c0_i32 = arith.constant 0 : i32
    %c0_i32_0 = arith.constant 0 : i32
    %c0_i32_1 = arith.constant 0 : i32
    %c0_i32_2 = arith.constant 0 : i32
    return %c0_i32, %c0_i32_0, %c0_i32_1 : i32, i32, i32
  }
  func.func @transform_5(%arg0: i32) -> (i32, i32, i32) {
    %c0_i32 = arith.constant 0 : i32
    %c0_i32_0 = arith.constant 0 : i32
    %c0_i32_1 = arith.constant 0 : i32
    %c0_i32_2 = arith.constant 0 : i32
    return %c0_i32, %c0_i32_0, %c0_i32_1 : i32, i32, i32
  }
  func.func @transform_6(%arg0: i32) -> (i32, i32) {
    %c0_i32 = arith.constant 0 : i32
    %c0_i32_0 = arith.constant 0 : i32
    %c0_i32_1 = arith.constant 0 : i32
    return %c0_i32, %c0_i32_0 : i32, i32
  }
  func.func @transform_7(%arg0: i32) -> (i32, i32) {
    %c0_i32 = arith.constant 0 : i32
    %c0_i32_0 = arith.constant 0 : i32
    %c0_i32_1 = arith.constant 0 : i32
    return %c0_i32, %c0_i32_0 : i32, i32
  }
  func.func @transform_8(%arg0: i32) -> (i32, i32) {
    %c0_i32 = arith.constant 0 : i32
    %c0_i32_0 = arith.constant 0 : i32
    %c0_i32_1 = arith.constant 0 : i32
    return %c0_i32, %c0_i32_0 : i32, i32
  }
  func.func @transform_9(%arg0: i32) -> (i32, i32) {
    %c0_i32 = arith.constant 0 : i32
    %c0_i32_0 = arith.constant 0 : i32
    %c0_i32_1 = arith.constant 0 : i32
    return %c0_i32, %c0_i32_0 : i32, i32
  }
  func.func @transform_10(%arg0: i32) -> (i32, i32) {
    %c0_i32 = arith.constant 0 : i32
    %c0_i32_0 = arith.constant 0 : i32
    return %arg0, %c0_i32 : i32, i32
  }
}

</mosaic_0001>

<llo_original>
// kernel: tpu_custom_call.1
$region0: #{tpu_custom_call.1}
  #allocation0 [shape = 'u32[]', space=smem, size = 0x4, offset = 0x4, fixed_abs, tag = 'smem constant byte address 0x4 - core index']
  #allocation1 [shape = 'u32[144,128]{1,0:T(1,128)}', space=vmem, size = 0x12000, scoped, tag = 'internal scratch']
  %s0 = inlined_call_operand.vmem [shape: f32[32,32], index: 0, kind: input, shape index: {}]
  %s1 = inlined_call_operand.vmem [shape: f32[64,32], index: 1, kind: input, shape index: {}]
  %s2 = inlined_call_operand.vmem [shape: f32[32,32], index: 2, kind: input, shape index: {}]
  %s3 = inlined_call_operand.vmem [shape: f32[64,32], index: 3, kind: input, shape index: {}]
  %s4 = inlined_call_operand.vmem [shape: f32[3,32,32], index: 4, kind: input, shape index: {}]
  %s5 = inlined_call_operand.vmem [shape: f32[3,1,32], index: 5, kind: input, shape index: {}]
  %s6 = inlined_call_operand.hbm [shape: f32[32,32], index: 6, kind: input, shape index: {}]
  %s7 = inlined_call_operand.vmem [shape: f32[1,32], index: 7, kind: input, shape index: {}]
  %s8 = inlined_call_operand.vmem [shape: f32[1,32], index: 8, kind: input, shape index: {}]
  %s9 = inlined_call_operand.vmem [shape: f32[1,32], index: 9, kind: input, shape index: {}]
  %s10 = inlined_call_operand.hbm [shape: f32[32,32], index: 10, kind: output, shape index: {}]
  %s11 = sld [smem:[#allocation0]]
  $region54: #{tpu_custom_call.1} parent=0
    _
  %s13 = ssub.s32 1, %s11
  %s14 = scalar_select 0, %s13, %s11
  $region1: #{tpu_custom_call.1} parent=0
    #allocation2 [shape = 'u8[16384]{0}', space=vmem, size = 0x4000, scoped, tag = 'input window, operand 6, single buffered']
    #allocation3 [shape = 's32[1]{0}', space=sflag, size = 0x4, scoped, tag = 'scoped memory for tpu_custom_call.1']
    #allocation4 [shape = 's32[1]{0}', space=sflag, size = 0x4, scoped, tag = 'scoped memory for tpu_custom_call.1']
    #allocation5 [shape = 'u8[16384]{0}', space=vmem, size = 0x4000, scoped, tag = 'output window, operand 0, single buffered']
    %15 = vsyncpa [#allocation3], 0
    %16 = vsyncpa [#allocation4], 0
    // Predicated region
    $region2: #{tpu_custom_call.1} parent=1 // pred_check
      _
    $region3: #{tpu_custom_call.1} parent=1 // pred_check_branch
      %18 = sbr.rel (0) target = $region5
    $region4: #{tpu_custom_call.1} parent=1 // pred_region
      _
    $region5: #{tpu_custom_call.1} parent=1 // pred_fallthru
      _
    // Predicated region
    $region6: #{tpu_custom_call.1} parent=1 // pred_check
      _
    $region7: #{tpu_custom_call.1} parent=1 // pred_check_branch
      %20 = sbr.rel (0) target = $region9
    $region8: #{tpu_custom_call.1} parent=1 // pred_region
      _
    $region9: #{tpu_custom_call.1} parent=1 // pred_fallthru
      _
    // Predicated region
    $region10: #{tpu_custom_call.1} parent=1 // pred_check
      _
    $region11: #{tpu_custom_call.1} parent=1 // pred_check_branch
      %22 = sbr.rel (0) target = $region13
    $region12: #{tpu_custom_call.1} parent=1 // pred_region
      _
    $region13: #{tpu_custom_call.1} parent=1 // pred_fallthru
      _
    // Predicated region
    $region14: #{tpu_custom_call.1} parent=1 // pred_check
      _
    $region15: #{tpu_custom_call.1} parent=1 // pred_check_branch
      %24 = sbr.rel (0) target = $region17
    $region16: #{tpu_custom_call.1} parent=1 // pred_region
      _
    $region17: #{tpu_custom_call.1} parent=1 // pred_fallthru
      _
    // Predicated region
    $region18: #{tpu_custom_call.1} parent=1 // pred_check
      _
    $region19: #{tpu_custom_call.1} parent=1 // pred_check_branch
      %26 = sbr.rel (0) target = $region21
    $region20: #{tpu_custom_call.1} parent=1 // pred_region
      _
    $region21: #{tpu_custom_call.1} parent=1 // pred_fallthru
      _
    // Predicated region
    $region22: #{tpu_custom_call.1} parent=1 // pred_check
      _
    $region23: #{tpu_custom_call.1} parent=1 // pred_check_branch
      %28 = sbr.rel (0) target = $region25
    $region24: #{tpu_custom_call.1} parent=1 // pred_region
      _
    $region25: #{tpu_custom_call.1} parent=1 // pred_fallthru
      _
    // Predicated region
    $region26: #{tpu_custom_call.1} parent=1 // pred_check
      _
    $region27: #{tpu_custom_call.1} parent=1 // pred_check_branch
      %30 = sbr.rel (0) target = $region29
    $region28: #{tpu_custom_call.1} parent=1 // pred_region
      %s32 = ssub.s32 512, 512
      %33 = vsyncadd [#allocation3], %s32
      %s34 = sshll.u32 [#allocation2], 4
      %s35 = int_to_ptr.vmem [resolvable:$true] %s34
      %40 = dma.hbm_to_vmem [thread:$0]  %s6, 512, %s35, [#allocation3], 128, 128, 8
    $region29: #{tpu_custom_call.1} parent=1 // pred_fallthru
      _
    // Predicated region
    $region30: #{tpu_custom_call.1} parent=1 // pred_check
      _
    $region31: #{tpu_custom_call.1} parent=1 // pred_check_branch
      %42 = sbr.rel (0) target = $region33
    $region32: #{tpu_custom_call.1} parent=1 // pred_region
      _
    $region33: #{tpu_custom_call.1} parent=1 // pred_fallthru
      _
    // Predicated region
    $region34: #{tpu_custom_call.1} parent=1 // pred_check
      _
    $region35: #{tpu_custom_call.1} parent=1 // pred_check_branch
      %44 = sbr.rel (0) target = $region37
    $region36: #{tpu_custom_call.1} parent=1 // pred_region
      _
    $region37: #{tpu_custom_call.1} parent=1 // pred_fallthru
      _
    // Predicated region
    $region38: #{tpu_custom_call.1} parent=1 // pred_check
      _
    $region39: #{tpu_custom_call.1} parent=1 // pred_check_branch
      %46 = sbr.rel (0) target = $region41
    $region40: #{tpu_custom_call.1} parent=1 // pred_region
      _
    $region41: #{tpu_custom_call.1} parent=1 // pred_fallthru
      _
    // Predicated region
    $region42: #{tpu_custom_call.1} parent=1 // pred_check
      _
    $region43: #{tpu_custom_call.1} parent=1 // pred_check_branch
      %48 = sbr.rel (0) target = $region45
    $region44: #{tpu_custom_call.1} parent=1 // pred_region
      %49 = dma.done [#allocation3], 512
    $region45: #{tpu_custom_call.1} parent=1 // pred_fallthru
      _
    %v50 = vld [vmem:[%s0] sm:$0xff]
    %v51 = vld [vmem:[%s0 + $0x8] sm:$0xff]
    %v52 = vld [vmem:[%s0 + $0x10] sm:$0xff]
    %v53 = vld [vmem:[%s0 + $0x18] sm:$0xff]
    %v54 = vld [vmem:[%s2] sm:$0xff]
    %v55 = vld [vmem:[%s2 + $0x8] sm:$0xff]
    %v56 = vld [vmem:[%s2 + $0x10] sm:$0xff]
    %v57 = vld [vmem:[%s2 + $0x18] sm:$0xff]
    %v58 = vadd.f32 %v50, %v54
    %v59 = vadd.f32 %v51, %v55
    %v60 = vadd.f32 %v52, %v56
    %v61 = vadd.f32 %v53, %v57
    %v62 = vld [vmem:[%s1] sm:$0xff]
    %v63 = vld [vmem:[%s1 + $0x8] sm:$0xff]
    %v64 = vld [vmem:[%s1 + $0x10] sm:$0xff]
    %v65 = vld [vmem:[%s1 + $0x18] sm:$0xff]
    %v66 = vld [vmem:[%s1 + $0x20] sm:$0xff]
    %v67 = vld [vmem:[%s1 + $0x28] sm:$0xff]
    %v68 = vld [vmem:[%s1 + $0x30] sm:$0xff]
    %v69 = vld [vmem:[%s1 + $0x38] sm:$0xff]
    %v70 = vld [vmem:[%s3] sm:$0xff]
    %v71 = vld [vmem:[%s3 + $0x8] sm:$0xff]
    %v72 = vld [vmem:[%s3 + $0x10] sm:$0xff]
    %v73 = vld [vmem:[%s3 + $0x18] sm:$0xff]
    %v74 = vld [vmem:[%s3 + $0x20] sm:$0xff]
    %v75 = vld [vmem:[%s3 + $0x28] sm:$0xff]
    %v76 = vld [vmem:[%s3 + $0x30] sm:$0xff]
    %v77 = vld [vmem:[%s3 + $0x38] sm:$0xff]
    %v78 = vadd.f32 %v62, %v70
    %v79 = vadd.f32 %v63, %v71
    %v80 = vadd.f32 %v64, %v72
    %v81 = vadd.f32 %v65, %v73
    %v82 = vadd.f32 %v66, %v74
    %v83 = vadd.f32 %v67, %v75
    %v84 = vadd.f32 %v68, %v76
    %v85 = vadd.f32 %v69, %v77
    %v86 = vld [vmem:[%s4] sm:$0xff]
    %v87 = vld [vmem:[%s4 + $0x8] sm:$0xff]
    %v88 = vld [vmem:[%s4 + $0x10] sm:$0xff]
    %v89 = vld [vmem:[%s4 + $0x18] sm:$0xff]
    %v90 = vld [vmem:[%s5] sm:$0x1]
    %v92 = vlaneseq
    %v93 = vshrl.u32 %v92, 7
    %v94 = vsub.s32 0, %v93
    %v95 = vrot.slane %v90, %v94
    %vm97 = vcmask 261120
    %v99 = vsel %vm97, %v58, 0
    %v102 = vsel %vm97, %v59, 0
    %v105 = vsel %vm97, %v60, 0
    %v108 = vsel %vm97, %v61, 0
    %110 = vmatprep.subr.mxu0 0.0
    %111 = vmatpush1.msra.mxu0 %v86
    %112 = vmatprep.subr.mxu0 0.0
    %113 = vmatpush1.msra.mxu0 %v87
    %114 = vmatprep.subr.mxu0 0.0
    %115 = vmatpush1.msra.mxu0 %v88
    %116 = vmatprep.subr.mxu0 0.0
    %117 = vmatpush1.msra.mxu0 %v89
    %118 = vmatprep.subr.mxu0 0.0
    %119 = vmatpush1.msra.mxu0 0.0
    %120 = vmatprep.subr.mxu0 0.0
    %121 = vmatpush1.msra.mxu0 0.0
    %122 = vmatprep.subr.mxu0 0.0
    %123 = vmatpush1.msra.mxu0 0.0
    %124 = vmatprep.subr.mxu0 0.0
    %125 = vmatpush1.msra.mxu0 0.0
    %126 = vmatprep.subr.mxu0 0.0
    %127 = vmatpush1.msra.mxu0 0.0
    %128 = vmatprep.subr.mxu0 0.0
    %129 = vmatpush1.msra.mxu0 0.0
    %130 = vmatprep.subr.mxu0 0.0
    %131 = vmatpush1.msra.mxu0 0.0
    %132 = vmatprep.subr.mxu0 0.0
    %133 = vmatpush1.msra.mxu0 0.0
    %134 = vmatprep.subr.mxu0 0.0
    %135 = vmatpush1.msra.mxu0 0.0
    %136 = vmatprep.subr.mxu0 0.0
    %137 = vmatpush1.msra.mxu0 0.0
    %138 = vmatprep.subr.mxu0 0.0
    %139 = vmatpush1.msra.mxu0 0.0
    %140 = vmatprep.subr.mxu0 0.0
    %141 = vmatpush1.msra.mxu0 0.0
    %142 = vmatprep.subr.mxu0 0.0
    %143 = vmatpush1.msra.mxu0 0.0
    %144 = vmatprep.subr.mxu0 0.0
    %145 = vmatpush1.msra.mxu0 0.0
    %146 = vmatprep.subr.mxu0 0.0
    %147 = vmatpush1.msra.mxu0 0.0
    %148 = vmatprep.subr.mxu0 0.0
    %149 = vmatpush1.msra.mxu0 0.0
    %150 = vmatprep.subr.mxu0 0.0
    %151 = vmatpush1.msra.mxu0 0.0
    %152 = vmatprep.subr.mxu0 0.0
    %153 = vmatpush1.msra.mxu0 0.0
    %154 = vmatprep.subr.mxu0 0.0
    %155 = vmatpush1.msra.mxu0 0.0
    %156 = vmatprep.subr.mxu0 0.0
    %157 = vmatpush1.msra.mxu0 0.0
    %158 = vmatprep.subr.mxu0 0.0
    %159 = vmatpush1.msra.mxu0 0.0
    %160 = vmatprep.subr.mxu0 0.0
    %161 = vmatpush1.msra.mxu0 0.0
    %162 = vmatprep.subr.mxu0 0.0
    %163 = vmatpush1.msra.mxu0 0.0
    %164 = vmatprep.subr.mxu0 0.0
    %165 = vmatpush1.msra.mxu0 0.0
    %166 = vmatprep.subr.mxu0 0.0
    %167 = vmatpush1.msra.mxu0 0.0
    %168 = vmatprep.subr.mxu0 0.0
    %169 = vmatpush1.msra.mxu0 0.0
    %170 = vmatprep.subr.mxu0 0.0
    %171 = vmatpush1.msra.mxu0 0.0
    %172 = vmatprep.subr.mxu0 0.0
    %173 = vmatpush1.msra.mxu0 0.0
    %174 = vmatprep.mubr.f32.mxu0 0.0
    %175 = vmatmul.mubr.f32.gmra.mrb[0].mxu0 %v99
    %v176 = vpop.f32.mrb[0].mxu0
    %v177 = vadd.f32 %v95, %v176
    %v178 = vpop.f32.mrb[0].mxu0
    %179 = vmatprep.mubr.f32.mxu0 0.0
    %180 = vmatmul.mubr.f32.gmra.mrb[0].mxu0 %v102
    %v181 = vpop.f32.mrb[0].mxu0
    %v182 = vadd.f32 %v95, %v181
    %v183 = vpop.f32.mrb[0].mxu0
    %184 = vmatprep.mubr.f32.mxu0 0.0
    %185 = vmatmul.mubr.f32.gmra.mrb[0].mxu0 %v105
    %v186 = vpop.f32.mrb[0].mxu0
    %v187 = vadd.f32 %v95, %v186
    %v188 = vpop.f32.mrb[0].mxu0
    %189 = vmatprep.mubr.f32.mxu0 0.0
    %190 = vmatmul.mubr.f32.gmra.mrb[0].mxu0 %v108
    %v191 = vpop.f32.mrb[0].mxu0
    %v192 = vadd.f32 %v95, %v191
    %v193 = vpop.f32.mrb[0].mxu0
    %194 = vdwg.mxu0
    %s195 = scalar_lea.vmem %s4, 32
    %v196 = vld [vmem:[%s195] sm:$0xff]
    %v197 = vld [vmem:[%s195 + $0x8] sm:$0xff]
    %v198 = vld [vmem:[%s195 + $0x10] sm:$0xff]
    %v199 = vld [vmem:[%s195 + $0x18] sm:$0xff]
    %s200 = scalar_lea.vmem %s5, 1
    %v201 = vld [vmem:[%s200] sm:$0x1]
    %v203 = vlaneseq
    %v204 = vshrl.u32 %v203, 7
    %v205 = vsub.s32 0, %v204
    %v206 = vrot.slane %v201, %v205
    %v209 = vsel %vm97, %v78, 0
    %v212 = vsel %vm97, %v79, 0
    %v215 = vsel %vm97, %v80, 0
    %v218 = vsel %vm97, %v81, 0
    %v221 = vsel %vm97, %v82, 0
    %v224 = vsel %vm97, %v83, 0
    %v227 = vsel %vm97, %v84, 0
    %v230 = vsel %vm97, %v85, 0
    %232 = vmatprep.subr.mxu0 0.0
    %233 = vmatpush1.msra.mxu0 %v196
    %234 = vmatprep.subr.mxu0 0.0
    %235 = vmatpush1.msra.mxu0 %v197
    %236 = vmatprep.subr.mxu0 0.0
    %237 = vmatpush1.msra.mxu0 %v198
    %238 = vmatprep.subr.mxu0 0.0
    %239 = vmatpush1.msra.mxu0 %v199
    %240 = vmatprep.subr.mxu0 0.0
    %241 = vmatpush1.msra.mxu0 0.0
    %242 = vmatprep.subr.mxu0 0.0
    %243 = vmatpush1.msra.mxu0 0.0
    %244 = vmatprep.subr.mxu0 0.0
    %245 = vmatpush1.msra.mxu0 0.0
    %246 = vmatprep.subr.mxu0 0.0
    %247 = vmatpush1.msra.mxu0 0.0
    %248 = vmatprep.subr.mxu0 0.0
    %249 = vmatpush1.msra.mxu0 0.0
    %250 = vmatprep.subr.mxu0 0.0
    %251 = vmatpush1.msra.mxu0 0.0
    %252 = vmatprep.subr.mxu0 0.0
    %253 = vmatpush1.msra.mxu0 0.0
    %254 = vmatprep.subr.mxu0 0.0
    %255 = vmatpush1.msra.mxu0 0.0
    %256 = vmatprep.subr.mxu0 0.0
    %257 = vmatpush1.msra.mxu0 0.0
    %258 = vmatprep.subr.mxu0 0.0
    %259 = vmatpush1.msra.mxu0 0.0
    %260 = vmatprep.subr.mxu0 0.0
    %261 = vmatpush1.msra.mxu0 0.0
    %262 = vmatprep.subr.mxu0 0.0
    %263 = vmatpush1.msra.mxu0 0.0
    %264 = vmatprep.subr.mxu0 0.0
    %265 = vmatpush1.msra.mxu0 0.0
    %266 = vmatprep.subr.mxu0 0.0
    %267 = vmatpush1.msra.mxu0 0.0
    %268 = vmatprep.subr.mxu0 0.0
    %269 = vmatpush1.msra.mxu0 0.0
    %270 = vmatprep.subr.mxu0 0.0
    %271 = vmatpush1.msra.mxu0 0.0
    %272 = vmatprep.subr.mxu0 0.0
    %273 = vmatpush1.msra.mxu0 0.0
    %274 = vmatprep.subr.mxu0 0.0
    %275 = vmatpush1.msra.mxu0 0.0
    %276 = vmatprep.subr.mxu0 0.0
    %277 = vmatpush1.msra.mxu0 0.0
    %278 = vmatprep.subr.mxu0 0.0
    %279 = vmatpush1.msra.mxu0 0.0
    %280 = vmatprep.subr.mxu0 0.0
    %281 = vmatpush1.msra.mxu0 0.0
    %282 = vmatprep.subr.mxu0 0.0
    %283 = vmatpush1.msra.mxu0 0.0
    %284 = vmatprep.subr.mxu0 0.0
    %285 = vmatpush1.msra.mxu0 0.0
    %286 = vmatprep.subr.mxu0 0.0
    %287 = vmatpush1.msra.mxu0 0.0
    %288 = vmatprep.subr.mxu0 0.0
    %289 = vmatpush1.msra.mxu0 0.0
    %290 = vmatprep.subr.mxu0 0.0
    %291 = vmatpush1.msra.mxu0 0.0
    %292 = vmatprep.subr.mxu0 0.0
    %293 = vmatpush1.msra.mxu0 0.0
    %294 = vmatprep.subr.mxu0 0.0
    %295 = vmatpush1.msra.mxu0 0.0
    %296 = vmatprep.mubr.f32.mxu0 0.0
    %297 = vmatmul.mubr.f32.gmra.mrb[0].mxu0 %v209
    %v298 = vpop.f32.mrb[0].mxu0
    %v299 = vadd.f32 %v206, %v298
    %v300 = vpop.f32.mrb[0].mxu0
    %301 = vmatprep.mubr.f32.mxu0 0.0
    %302 = vmatmul.mubr.f32.gmra.mrb[0].mxu0 %v212
    %v303 = vpop.f32.mrb[0].mxu0
    %v304 = vadd.f32 %v206, %v303
    %v305 = vpop.f32.mrb[0].mxu0
    %306 = vmatprep.mubr.f32.mxu0 0.0
    %307 = vmatmul.mubr.f32.gmra.mrb[0].mxu0 %v215
    %v308 = vpop.f32.mrb[0].mxu0
    %v309 = vadd.f32 %v206, %v308
    %v310 = vpop.f32.mrb[0].mxu0
    %311 = vmatprep.mubr.f32.mxu0 0.0
    %312 = vmatmul.mubr.f32.gmra.mrb[0].mxu0 %v218
    %v313 = vpop.f32.mrb[0].mxu0
    %v314 = vadd.f32 %v206, %v313
    %v315 = vpop.f32.mrb[0].mxu0
    %316 = vmatprep.mubr.f32.mxu0 0.0
    %317 = vmatmul.mubr.f32.gmra.mrb[0].mxu0 %v221
    %v318 = vpop.f32.mrb[0].mxu0
    %v319 = vadd.f32 %v206, %v318
    %v320 = vpop.f32.mrb[0].mxu0
    %321 = vmatprep.mubr.f32.mxu0 0.0
    %322 = vmatmul.mubr.f32.gmra.mrb[0].mxu0 %v224
    %v323 = vpop.f32.mrb[0].mxu0
    %v324 = vadd.f32 %v206, %v323
    %v325 = vpop.f32.mrb[0].mxu0
    %326 = vmatprep.mubr.f32.mxu0 0.0
    %327 = vmatmul.mubr.f32.gmra.mrb[0].mxu0 %v227
    %v328 = vpop.f32.mrb[0].mxu0
    %v329 = vadd.f32 %v206, %v328
    %v330 = vpop.f32.mrb[0].mxu0
    %331 = vmatprep.mubr.f32.mxu0 0.0
    %332 = vmatmul.mubr.f32.gmra.mrb[0].mxu0 %v230
    %v333 = vpop.f32.mrb[0].mxu0
    %v334 = vadd.f32 %v206, %v333
    %v335 = vpop.f32.mrb[0].mxu0
    %336 = vdwg.mxu0
    %s337 = scalar_lea.vmem %s4, 64
    %v338 = vld [vmem:[%s337] sm:$0xff]
    %v339 = vld [vmem:[%s337 + $0x8] sm:$0xff]
    %v340 = vld [vmem:[%s337 + $0x10] sm:$0xff]
    %v341 = vld [vmem:[%s337 + $0x18] sm:$0xff]
    %s342 = scalar_lea.vmem %s5, 2
    %v343 = vld [vmem:[%s342] sm:$0x1]
    %v345 = vlaneseq
    %v346 = vshrl.u32 %v345, 7
    %v347 = vsub.s32 0, %v346
    %v348 = vrot.slane %v343, %v347
    %v351 = vsel %vm97, %v62, 0
    %v354 = vsel %vm97, %v63, 0
    %v357 = vsel %vm97, %v64, 0
    %v360 = vsel %vm97, %v65, 0
    %v363 = vsel %vm97, %v66, 0
    %v366 = vsel %vm97, %v67, 0
    %v369 = vsel %vm97, %v68, 0
    %v372 = vsel %vm97, %v69, 0
    %374 = vmatprep.subr.mxu0 0.0
    %375 = vmatpush1.msra.mxu0 %v338
    %376 = vmatprep.subr.mxu0 0.0
    %377 = vmatpush1.msra.mxu0 %v339
    %378 = vmatprep.subr.mxu0 0.0
    %379 = vmatpush1.msra.mxu0 %v340
    %380 = vmatprep.subr.mxu0 0.0
    %381 = vmatpush1.msra.mxu0 %v341
    %382 = vmatprep.subr.mxu0 0.0
    %383 = vmatpush1.msra.mxu0 0.0
    %384 = vmatprep.subr.mxu0 0.0
    %385 = vmatpush1.msra.mxu0 0.0
    %386 = vmatprep.subr.mxu0 0.0
    %387 = vmatpush1.msra.mxu0 0.0
    %388 = vmatprep.subr.mxu0 0.0
    %389 = vmatpush1.msra.mxu0 0.0
    %390 = vmatprep.subr.mxu0 0.0
    %391 = vmatpush1.msra.mxu0 0.0
    %392 = vmatprep.subr.mxu0 0.0
    %393 = vmatpush1.msra.mxu0 0.0
    %394 = vmatprep.subr.mxu0 0.0
    %395 = vmatpush1.msra.mxu0 0.0
    %396 = vmatprep.subr.mxu0 0.0
    %397 = vmatpush1.msra.mxu0 0.0
    %398 = vmatprep.subr.mxu0 0.0
    %399 = vmatpush1.msra.mxu0 0.0
    %400 = vmatprep.subr.mxu0 0.0
    %401 = vmatpush1.msra.mxu0 0.0
    %402 = vmatprep.subr.mxu0 0.0
    %403 = vmatpush1.msra.mxu0 0.0
    %404 = vmatprep.subr.mxu0 0.0
    %405 = vmatpush1.msra.mxu0 0.0
    %406 = vmatprep.subr.mxu0 0.0
    %407 = vmatpush1.msra.mxu0 0.0
    %408 = vmatprep.subr.mxu0 0.0
    %409 = vmatpush1.msra.mxu0 0.0
    %410 = vmatprep.subr.mxu0 0.0
    %411 = vmatpush1.msra.mxu0 0.0
    %412 = vmatprep.subr.mxu0 0.0
    %413 = vmatpush1.msra.mxu0 0.0
    %414 = vmatprep.subr.mxu0 0.0
    %415 = vmatpush1.msra.mxu0 0.0
    %416 = vmatprep.subr.mxu0 0.0
    %417 = vmatpush1.msra.mxu0 0.0
    %418 = vmatprep.subr.mxu0 0.0
    %419 = vmatpush1.msra.mxu0 0.0
    %420 = vmatprep.subr.mxu0 0.0
    %421 = vmatpush1.msra.mxu0 0.0
    %422 = vmatprep.subr.mxu0 0.0
    %423 = vmatpush1.msra.mxu0 0.0
    %424 = vmatprep.subr.mxu0 0.0
    %425 = vmatpush1.msra.mxu0 0.0
    %426 = vmatprep.subr.mxu0 0.0
    %427 = vmatpush1.msra.mxu0 0.0
    %428 = vmatprep.subr.mxu0 0.0
    %429 = vmatpush1.msra.mxu0 0.0
    %430 = vmatprep.subr.mxu0 0.0
    %431 = vmatpush1.msra.mxu0 0.0
    %432 = vmatprep.subr.mxu0 0.0
    %433 = vmatpush1.msra.mxu0 0.0
    %434 = vmatprep.subr.mxu0 0.0
    %435 = vmatpush1.msra.mxu0 0.0
    %436 = vmatprep.subr.mxu0 0.0
    %437 = vmatpush1.msra.mxu0 0.0
    %438 = vmatprep.mubr.f32.mxu0 0.0
    %439 = vmatmul.mubr.f32.gmra.mrb[0].mxu0 %v351
    %v440 = vpop.f32.mrb[0].mxu0
    %v441 = vadd.f32 %v348, %v440
    %v442 = vpop.f32.mrb[0].mxu0
    %443 = vmatprep.mubr.f32.mxu0 0.0
    %444 = vmatmul.mubr.f32.gmra.mrb[0].mxu0 %v354
    %v445 = vpop.f32.mrb[0].mxu0
    %v446 = vadd.f32 %v348, %v445
    %v447 = vpop.f32.mrb[0].mxu0
    %448 = vmatprep.mubr.f32.mxu0 0.0
    %449 = vmatmul.mubr.f32.gmra.mrb[0].mxu0 %v357
    %v450 = vpop.f32.mrb[0].mxu0
    %v451 = vadd.f32 %v348, %v450
    %v452 = vpop.f32.mrb[0].mxu0
    %453 = vmatprep.mubr.f32.mxu0 0.0
    %454 = vmatmul.mubr.f32.gmra.mrb[0].mxu0 %v360
    %v455 = vpop.f32.mrb[0].mxu0
    %v456 = vadd.f32 %v348, %v455
    %v457 = vpop.f32.mrb[0].mxu0
    %458 = vmatprep.mubr.f32.mxu0 0.0
    %459 = vmatmul.mubr.f32.gmra.mrb[0].mxu0 %v363
    %v460 = vpop.f32.mrb[0].mxu0
    %v461 = vadd.f32 %v348, %v460
    %v462 = vpop.f32.mrb[0].mxu0
    %463 = vmatprep.mubr.f32.mxu0 0.0
    %464 = vmatmul.mubr.f32.gmra.mrb[0].mxu0 %v366
    %v465 = vpop.f32.mrb[0].mxu0
    %v466 = vadd.f32 %v348, %v465
    %v467 = vpop.f32.mrb[0].mxu0
    %468 = vmatprep.mubr.f32.mxu0 0.0
    %469 = vmatmul.mubr.f32.gmra.mrb[0].mxu0 %v369
    %v470 = vpop.f32.mrb[0].mxu0
    %v471 = vadd.f32 %v348, %v470
    %v472 = vpop.f32.mrb[0].mxu0
    %473 = vmatprep.mubr.f32.mxu0 0.0
    %474 = vmatmul.mubr.f32.gmra.mrb[0].mxu0 %v372
    %v475 = vpop.f32.mrb[0].mxu0
    %v476 = vadd.f32 %v348, %v475
    %v477 = vpop.f32.mrb[0].mxu0
    %478 = vdwg.mxu0
    %483 = vrot.lane.b32.xlu0 %v177, 120
    %v484 = vpop.permute.xlu0 %483
    %485 = vrot.lane.b32.xlu0 %v182, 120
    %v486 = vpop.permute.xlu0 %485
    %487 = vrot.lane.b32.xlu0 %v187, 120
    %v488 = vpop.permute.xlu0 %487
    %489 = vrot.lane.b32.xlu0 %v192, 120
    %v490 = vpop.permute.xlu0 %489
    %491 = vrot.lane.b32.xlu0 %v177, 112
    %v492 = vpop.permute.xlu0 %491
    %493 = vrot.lane.b32.xlu0 %v182, 112
    %v494 = vpop.permute.xlu0 %493
    %495 = vrot.lane.b32.xlu0 %v187, 112
    %v496 = vpop.permute.xlu0 %495
    %497 = vrot.lane.b32.xlu0 %v192, 112
    %v498 = vpop.permute.xlu0 %497
    %499 = vrot.lane.b32.xlu0 %v177, 104
    %v500 = vpop.permute.xlu0 %499
    %501 = vrot.lane.b32.xlu0 %v182, 104
    %v502 = vpop.permute.xlu0 %501
    %503 = vrot.lane.b32.xlu0 %v187, 104
    %v504 = vpop.permute.xlu0 %503
    %505 = vrot.lane.b32.xlu0 %v192, 104
    %v506 = vpop.permute.xlu0 %505
    %515 = vrot.lane.b32.xlu0 %v299, 120
    %v516 = vpop.permute.xlu0 %515
    %517 = vrot.lane.b32.xlu0 %v304, 120
    %v518 = vpop.permute.xlu0 %517
    %519 = vrot.lane.b32.xlu0 %v309, 120
    %v520 = vpop.permute.xlu0 %519
    %521 = vrot.lane.b32.xlu0 %v314, 120
    %v522 = vpop.permute.xlu0 %521
    %523 = vrot.lane.b32.xlu0 %v319, 120
    %v524 = vpop.permute.xlu0 %523
    %525 = vrot.lane.b32.xlu0 %v324, 120
    %v526 = vpop.permute.xlu0 %525
    %527 = vrot.lane.b32.xlu0 %v329, 120
    %v528 = vpop.permute.xlu0 %527
    %529 = vrot.lane.b32.xlu0 %v334, 120
    %v530 = vpop.permute.xlu0 %529
    %531 = vrot.lane.b32.xlu0 %v299, 112
    %v532 = vpop.permute.xlu0 %531
    %533 = vrot.lane.b32.xlu0 %v304, 112
    %v534 = vpop.permute.xlu0 %533
    %535 = vrot.lane.b32.xlu0 %v309, 112
    %v536 = vpop.permute.xlu0 %535
    %537 = vrot.lane.b32.xlu0 %v314, 112
    %v538 = vpop.permute.xlu0 %537
    %539 = vrot.lane.b32.xlu0 %v319, 112
    %v540 = vpop.permute.xlu0 %539
    %541 = vrot.lane.b32.xlu0 %v324, 112
    %v542 = vpop.permute.xlu0 %541
    %543 = vrot.lane.b32.xlu0 %v329, 112
    %v544 = vpop.permute.xlu0 %543
    %545 = vrot.lane.b32.xlu0 %v334, 112
    %v546 = vpop.permute.xlu0 %545
    %547 = vrot.lane.b32.xlu0 %v299, 104
    %v548 = vpop.permute.xlu0 %547
    %549 = vrot.lane.b32.xlu0 %v304, 104
    %v550 = vpop.permute.xlu0 %549
    %551 = vrot.lane.b32.xlu0 %v309, 104
    %v552 = vpop.permute.xlu0 %551
    %553 = vrot.lane.b32.xlu0 %v314, 104
    %v554 = vpop.permute.xlu0 %553
    %555 = vrot.lane.b32.xlu0 %v319, 104
    %v556 = vpop.permute.xlu0 %555
    %557 = vrot.lane.b32.xlu0 %v324, 104
    %v558 = vpop.permute.xlu0 %557
    %559 = vrot.lane.b32.xlu0 %v329, 104
    %v560 = vpop.permute.xlu0 %559
    %561 = vrot.lane.b32.xlu0 %v334, 104
    %v562 = vpop.permute.xlu0 %561
    %571 = vrot.lane.b32.xlu0 %v441, 120
    %v572 = vpop.permute.xlu0 %571
    %573 = vrot.lane.b32.xlu0 %v446, 120
    %v574 = vpop.permute.xlu0 %573
    %575 = vrot.lane.b32.xlu0 %v451, 120
    %v576 = vpop.permute.xlu0 %575
    %577 = vrot.lane.b32.xlu0 %v456, 120
    %v578 = vpop.permute.xlu0 %577
    %579 = vrot.lane.b32.xlu0 %v461, 120
    %v580 = vpop.permute.xlu0 %579
    %581 = vrot.lane.b32.xlu0 %v466, 120
    %v582 = vpop.permute.xlu0 %581
    %583 = vrot.lane.b32.xlu0 %v471, 120
    %v584 = vpop.permute.xlu0 %583
    %585 = vrot.lane.b32.xlu0 %v476, 120
    %v586 = vpop.permute.xlu0 %585
    %595 = vrot.lane.b32.xlu0 %v441, 112
    %v596 = vpop.permute.xlu0 %595
    %597 = vrot.lane.b32.xlu0 %v446, 112
    %v598 = vpop.permute.xlu0 %597
    %599 = vrot.lane.b32.xlu0 %v451, 112
    %v600 = vpop.permute.xlu0 %599
    %601 = vrot.lane.b32.xlu0 %v456, 112
    %v602 = vpop.permute.xlu0 %601
    %603 = vrot.lane.b32.xlu0 %v461, 112
    %v604 = vpop.permute.xlu0 %603
    %605 = vrot.lane.b32.xlu0 %v466, 112
    %v606 = vpop.permute.xlu0 %605
    %607 = vrot.lane.b32.xlu0 %v471, 112
    %v608 = vpop.permute.xlu0 %607
    %609 = vrot.lane.b32.xlu0 %v476, 112
    %v610 = vpop.permute.xlu0 %609
    %619 = vrot.lane.b32.xlu0 %v441, 104
    %v620 = vpop.permute.xlu0 %619
    %621 = vrot.lane.b32.xlu0 %v446, 104
    %v622 = vpop.permute.xlu0 %621
    %623 = vrot.lane.b32.xlu0 %v451, 104
    %v624 = vpop.permute.xlu0 %623
    %625 = vrot.lane.b32.xlu0 %v456, 104
    %v626 = vpop.permute.xlu0 %625
    %627 = vrot.lane.b32.xlu0 %v461, 104
    %v628 = vpop.permute.xlu0 %627
    %629 = vrot.lane.b32.xlu0 %v466, 104
    %v630 = vpop.permute.xlu0 %629
    %631 = vrot.lane.b32.xlu0 %v471, 104
    %v632 = vpop.permute.xlu0 %631
    %633 = vrot.lane.b32.xlu0 %v476, 104
    %v634 = vpop.permute.xlu0 %633
    %vm643 = vcmask 64512
    %v644 = vsel %vm643, %v177, 0
    %v646 = vsel %vm643, %v182, 0
    %v648 = vsel %vm643, %v187, 0
    %v650 = vsel %vm643, %v192, 0
    %v652 = vsel %vm643, %v299, 0
    %v654 = vsel %vm643, %v304, 0
    %v656 = vsel %vm643, %v309, 0
    %v658 = vsel %vm643, %v314, 0
    %v660 = vsel %vm643, %v319, 0
    %v662 = vsel %vm643, %v324, 0
    %v664 = vsel %vm643, %v329, 0
    %v666 = vsel %vm643, %v334, 0
    %668 = vmatprep.subr.mxu0 0.0
    %669 = vmatpush1.xpose.msra.mxu0 %v652
    %670 = vmatprep.subr.mxu0 0.0
    %671 = vmatpush1.xpose.msra.mxu0 %v654
    %672 = vmatprep.subr.mxu0 0.0
    %673 = vmatpush1.xpose.msra.mxu0 %v656
    %674 = vmatprep.subr.mxu0 0.0
    %675 = vmatpush1.xpose.msra.mxu0 %v658
    %676 = vmatprep.subr.mxu0 0.0
    %677 = vmatpush1.xpose.msra.mxu0 %v660
    %678 = vmatprep.subr.mxu0 0.0
    %679 = vmatpush1.xpose.msra.mxu0 %v662
    %680 = vmatprep.subr.mxu0 0.0
    %681 = vmatpush1.xpose.msra.mxu0 %v664
    %682 = vmatprep.subr.mxu0 0.0
    %683 = vmatpush1.xpose.msra.mxu0 %v666
    %684 = vmatprep.subr.mxu0 0.0
    %685 = vmatpush1.xpose.msra.mxu0 0.0
    %686 = vmatprep.subr.mxu0 0.0
    %687 = vmatpush1.xpose.msra.mxu0 0.0
    %688 = vmatprep.subr.mxu0 0.0
    %689 = vmatpush1.xpose.msra.mxu0 0.0
    %690 = vmatprep.subr.mxu0 0.0
    %691 = vmatpush1.xpose.msra.mxu0 0.0
    %692 = vmatprep.subr.mxu0 0.0
    %693 = vmatpush1.xpose.msra.mxu0 0.0
    %694 = vmatprep.subr.mxu0 0.0
    %695 = vmatpush1.xpose.msra.mxu0 0.0
    %696 = vmatprep.subr.mxu0 0.0
    %697 = vmatpush1.xpose.msra.mxu0 0.0
    %698 = vmatprep.subr.mxu0 0.0
    %699 = vmatpush1.xpose.msra.mxu0 0.0
    %700 = vmatprep.subr.mxu0 0.0
    %701 = vmatpush1.xpose.msra.mxu0 0.0
    %702 = vmatprep.subr.mxu0 0.0
    %703 = vmatpush1.xpose.msra.mxu0 0.0
    %704 = vmatprep.subr.mxu0 0.0
    %705 = vmatpush1.xpose.msra.mxu0 0.0
    %706 = vmatprep.subr.mxu0 0.0
    %707 = vmatpush1.xpose.msra.mxu0 0.0
    %708 = vmatprep.subr.mxu0 0.0
    %709 = vmatpush1.xpose.msra.mxu0 0.0
    %710 = vmatprep.subr.mxu0 0.0
    %711 = vmatpush1.xpose.msra.mxu0 0.0
    %712 = vmatprep.subr.mxu0 0.0
    %713 = vmatpush1.xpose.msra.mxu0 0.0
    %714 = vmatprep.subr.mxu0 0.0
    %715 = vmatpush1.xpose.msra.mxu0 0.0
    %716 = vmatprep.subr.mxu0 0.0
    %717 = vmatpush1.xpose.msra.mxu0 0.0
    %718 = vmatprep.subr.mxu0 0.0
    %719 = vmatpush1.xpose.msra.mxu0 0.0
    %720 = vmatprep.subr.mxu0 0.0
    %721 = vmatpush1.xpose.msra.mxu0 0.0
    %722 = vmatprep.subr.mxu0 0.0
    %723 = vmatpush1.xpose.msra.mxu0 0.0
    %724 = vmatprep.subr.mxu0 0.0
    %725 = vmatpush1.xpose.msra.mxu0 0.0
    %726 = vmatprep.subr.mxu0 0.0
    %727 = vmatpush1.xpose.msra.mxu0 0.0
    %728 = vmatprep.subr.mxu0 0.0
    %729 = vmatpush1.xpose.msra.mxu0 0.0
    %730 = vmatprep.subr.mxu0 0.0
    %731 = vmatpush1.xpose.msra.mxu0 0.0
    %732 = vmatprep.mubr.f32.mxu0 0.0
    %733 = vmatmul.mubr.f32.gmra.mrb[0].mxu0 %v644
    %v734 = vpop.f32.mrb[0].mxu0
    %v735 = vadd.f32 0.0, %v734
    %v736 = vpop.f32.mrb[0].mxu0
    %737 = vmatprep.mubr.f32.mxu0 0.0
    %738 = vmatmul.mubr.f32.gmra.mrb[0].mxu0 %v646
    %v739 = vpop.f32.mrb[0].mxu0
    %v740 = vadd.f32 0.0, %v739
    %v741 = vpop.f32.mrb[0].mxu0
    %742 = vmatprep.mubr.f32.mxu0 0.0
    %743 = vmatmul.mubr.f32.gmra.mrb[0].mxu0 %v648
    %v744 = vpop.f32.mrb[0].mxu0
    %v745 = vadd.f32 0.0, %v744
    %v746 = vpop.f32.mrb[0].mxu0
    %747 = vmatprep.mubr.f32.mxu0 0.0
    %748 = vmatmul.mubr.f32.gmra.mrb[0].mxu0 %v650
    %v749 = vpop.f32.mrb[0].mxu0
    %v750 = vadd.f32 0.0, %v749
    %v751 = vpop.f32.mrb[0].mxu0
    %752 = vdwg.mxu0
    %v753 = vsel %vm643, %v484, 0
    %v755 = vsel %vm643, %v486, 0
    %v757 = vsel %vm643, %v488, 0
    %v759 = vsel %vm643, %v490, 0
    %v761 = vsel %vm643, %v516, 0
    %v763 = vsel %vm643, %v518, 0
    %v765 = vsel %vm643, %v520, 0
    %v767 = vsel %vm643, %v522, 0
    %v769 = vsel %vm643, %v524, 0
    %v771 = vsel %vm643, %v526, 0
    %v773 = vsel %vm643, %v528, 0
    %v775 = vsel %vm643, %v530, 0
    %777 = vmatprep.subr.mxu0 0.0
    %778 = vmatpush1.xpose.msra.mxu0 %v761
    %779 = vmatprep.subr.mxu0 0.0
    %780 = vmatpush1.xpose.msra.mxu0 %v763
    %781 = vmatprep.subr.mxu0 0.0
    %782 = vmatpush1.xpose.msra.mxu0 %v765
    %783 = vmatprep.subr.mxu0 0.0
    %784 = vmatpush1.xpose.msra.mxu0 %v767
    %785 = vmatprep.subr.mxu0 0.0
    %786 = vmatpush1.xpose.msra.mxu0 %v769
    %787 = vmatprep.subr.mxu0 0.0
    %788 = vmatpush1.xpose.msra.mxu0 %v771
    %789 = vmatprep.subr.mxu0 0.0
    %790 = vmatpush1.xpose.msra.mxu0 %v773
    %791 = vmatprep.subr.mxu0 0.0
    %792 = vmatpush1.xpose.msra.mxu0 %v775
    %793 = vmatprep.subr.mxu0 0.0
    %794 = vmatpush1.xpose.msra.mxu0 0.0
    %795 = vmatprep.subr.mxu0 0.0
    %796 = vmatpush1.xpose.msra.mxu0 0.0
    %797 = vmatprep.subr.mxu0 0.0
    %798 = vmatpush1.xpose.msra.mxu0 0.0
    %799 = vmatprep.subr.mxu0 0.0
    %800 = vmatpush1.xpose.msra.mxu0 0.0
    %801 = vmatprep.subr.mxu0 0.0
    %802 = vmatpush1.xpose.msra.mxu0 0.0
    %803 = vmatprep.subr.mxu0 0.0
    %804 = vmatpush1.xpose.msra.mxu0 0.0
    %805 = vmatprep.subr.mxu0 0.0
    %806 = vmatpush1.xpose.msra.mxu0 0.0
    %807 = vmatprep.subr.mxu0 0.0
    %808 = vmatpush1.xpose.msra.mxu0 0.0
    %809 = vmatprep.subr.mxu0 0.0
    %810 = vmatpush1.xpose.msra.mxu0 0.0
    %811 = vmatprep.subr.mxu0 0.0
    %812 = vmatpush1.xpose.msra.mxu0 0.0
    %813 = vmatprep.subr.mxu0 0.0
    %814 = vmatpush1.xpose.msra.mxu0 0.0
    %815 = vmatprep.subr.mxu0 0.0
    %816 = vmatpush1.xpose.msra.mxu0 0.0
    %817 = vmatprep.subr.mxu0 0.0
    %818 = vmatpush1.xpose.msra.mxu0 0.0
    %819 = vmatprep.subr.mxu0 0.0
    %820 = vmatpush1.xpose.msra.mxu0 0.0
    %821 = vmatprep.subr.mxu0 0.0
    %822 = vmatpush1.xpose.msra.mxu0 0.0
    %823 = vmatprep.subr.mxu0 0.0
    %824 = vmatpush1.xpose.msra.mxu0 0.0
    %825 = vmatprep.subr.mxu0 0.0
    %826 = vmatpush1.xpose.msra.mxu0 0.0
    %827 = vmatprep.subr.mxu0 0.0
    %828 = vmatpush1.xpose.msra.mxu0 0.0
    %829 = vmatprep.subr.mxu0 0.0
    %830 = vmatpush1.xpose.msra.mxu0 0.0
    %831 = vmatprep.subr.mxu0 0.0
    %832 = vmatpush1.xpose.msra.mxu0 0.0
    %833 = vmatprep.subr.mxu0 0.0
    %834 = vmatpush1.xpose.msra.mxu0 0.0
    %835 = vmatprep.subr.mxu0 0.0
    %836 = vmatpush1.xpose.msra.mxu0 0.0
    %837 = vmatprep.subr.mxu0 0.0
    %838 = vmatpush1.xpose.msra.mxu0 0.0
    %839 = vmatprep.subr.mxu0 0.0
    %840 = vmatpush1.xpose.msra.mxu0 0.0
    %841 = vmatprep.mubr.f32.mxu0 0.0
    %842 = vmatmul.mubr.f32.gmra.mrb[0].mxu0 %v753
    %v843 = vpop.f32.mrb[0].mxu0
    %v844 = vadd.f32 0.0, %v843
    %v845 = vpop.f32.mrb[0].mxu0
    %846 = vmatprep.mubr.f32.mxu0 0.0
    %847 = vmatmul.mubr.f32.gmra.mrb[0].mxu0 %v755
    %v848 = vpop.f32.mrb[0].mxu0
    %v849 = vadd.f32 0.0, %v848
    %v850 = vpop.f32.mrb[0].mxu0
    %851 = vmatprep.mubr.f32.mxu0 0.0
    %852 = vmatmul.mubr.f32.gmra.mrb[0].mxu0 %v757
    %v853 = vpop.f32.mrb[0].mxu0
    %v854 = vadd.f32 0.0, %v853
    %v855 = vpop.f32.mrb[0].mxu0
    %856 = vmatprep.mubr.f32.mxu0 0.0
    %857 = vmatmul.mubr.f32.gmra.mrb[0].mxu0 %v759
    %v858 = vpop.f32.mrb[0].mxu0
    %v859 = vadd.f32 0.0, %v858
    %v860 = vpop.f32.mrb[0].mxu0
    %861 = vdwg.mxu0
    %v862 = vsel %vm643, %v492, 0
    %v864 = vsel %vm643, %v494, 0
    %v866 = vsel %vm643, %v496, 0
    %v868 = vsel %vm643, %v498, 0
    %v870 = vsel %vm643, %v532, 0
    %v872 = vsel %vm643, %v534, 0
    %v874 = vsel %vm643, %v536, 0
    %v876 = vsel %vm643, %v538, 0
    %v878 = vsel %vm643, %v540, 0
    %v880 = vsel %vm643, %v542, 0
    %v882 = vsel %vm643, %v544, 0
    %v884 = vsel %vm643, %v546, 0
    %886 = vmatprep.subr.mxu0 0.0
    %887 = vmatpush1.xpose.msra.mxu0 %v870
    %888 = vmatprep.subr.mxu0 0.0
    %889 = vmatpush1.xpose.msra.mxu0 %v872
    %890 = vmatprep.subr.mxu0 0.0
    %891 = vmatpush1.xpose.msra.mxu0 %v874
    %892 = vmatprep.subr.mxu0 0.0
    %893 = vmatpush1.xpose.msra.mxu0 %v876
    %894 = vmatprep.subr.mxu0 0.0
    %895 = vmatpush1.xpose.msra.mxu0 %v878
    %896 = vmatprep.subr.mxu0 0.0
    %897 = vmatpush1.xpose.msra.mxu0 %v880
    %898 = vmatprep.subr.mxu0 0.0
    %899 = vmatpush1.xpose.msra.mxu0 %v882
    %900 = vmatprep.subr.mxu0 0.0
    %901 = vmatpush1.xpose.msra.mxu0 %v884
    %902 = vmatprep.subr.mxu0 0.0
    %903 = vmatpush1.xpose.msra.mxu0 0.0
    %904 = vmatprep.subr.mxu0 0.0
    %905 = vmatpush1.xpose.msra.mxu0 0.0
    %906 = vmatprep.subr.mxu0 0.0
    %907 = vmatpush1.xpose.msra.mxu0 0.0
    %908 = vmatprep.subr.mxu0 0.0
    %909 = vmatpush1.xpose.msra.mxu0 0.0
    %910 = vmatprep.subr.mxu0 0.0
    %911 = vmatpush1.xpose.msra.mxu0 0.0
    %912 = vmatprep.subr.mxu0 0.0
    %913 = vmatpush1.xpose.msra.mxu0 0.0
    %914 = vmatprep.subr.mxu0 0.0
    %915 = vmatpush1.xpose.msra.mxu0 0.0
    %916 = vmatprep.subr.mxu0 0.0
    %917 = vmatpush1.xpose.msra.mxu0 0.0
    %918 = vmatprep.subr.mxu0 0.0
    %919 = vmatpush1.xpose.msra.mxu0 0.0
    %920 = vmatprep.subr.mxu0 0.0
    %921 = vmatpush1.xpose.msra.mxu0 0.0
    %922 = vmatprep.subr.mxu0 0.0
    %923 = vmatpush1.xpose.msra.mxu0 0.0
    %924 = vmatprep.subr.mxu0 0.0
    %925 = vmatpush1.xpose.msra.mxu0 0.0
    %926 = vmatprep.subr.mxu0 0.0
    %927 = vmatpush1.xpose.msra.mxu0 0.0
    %928 = vmatprep.subr.mxu0 0.0
    %929 = vmatpush1.xpose.msra.mxu0 0.0
    %930 = vmatprep.subr.mxu0 0.0
    %931 = vmatpush1.xpose.msra.mxu0 0.0
    %932 = vmatprep.subr.mxu0 0.0
    %933 = vmatpush1.xpose.msra.mxu0 0.0
    %934 = vmatprep.subr.mxu0 0.0
    %935 = vmatpush1.xpose.msra.mxu0 0.0
    %936 = vmatprep.subr.mxu0 0.0
    %937 = vmatpush1.xpose.msra.mxu0 0.0
    %938 = vmatprep.subr.mxu0 0.0
    %939 = vmatpush1.xpose.msra.mxu0 0.0
    %940 = vmatprep.subr.mxu0 0.0
    %941 = vmatpush1.xpose.msra.mxu0 0.0
    %942 = vmatprep.subr.mxu0 0.0
    %943 = vmatpush1.xpose.msra.mxu0 0.0
    %944 = vmatprep.subr.mxu0 0.0
    %945 = vmatpush1.xpose.msra.mxu0 0.0
    %946 = vmatprep.subr.mxu0 0.0
    %947 = vmatpush1.xpose.msra.mxu0 0.0
    %948 = vmatprep.subr.mxu0 0.0
    %949 = vmatpush1.xpose.msra.mxu0 0.0
    %950 = vmatprep.mubr.f32.mxu0 0.0
    %951 = vmatmul.mubr.f32.gmra.mrb[0].mxu0 %v862
    %v952 = vpop.f32.mrb[0].mxu0
    %v953 = vadd.f32 0.0, %v952
    %v954 = vpop.f32.mrb[0].mxu0
    %955 = vmatprep.mubr.f32.mxu0 0.0
    %956 = vmatmul.mubr.f32.gmra.mrb[0].mxu0 %v864
    %v957 = vpop.f32.mrb[0].mxu0
    %v958 = vadd.f32 0.0, %v957
    %v959 = vpop.f32.mrb[0].mxu0
    %960 = vmatprep.mubr.f32.mxu0 0.0
    %961 = vmatmul.mubr.f32.gmra.mrb[0].mxu0 %v866
    %v962 = vpop.f32.mrb[0].mxu0
    %v963 = vadd.f32 0.0, %v962
    %v964 = vpop.f32.mrb[0].mxu0
    %965 = vmatprep.mubr.f32.mxu0 0.0
    %966 = vmatmul.mubr.f32.gmra.mrb[0].mxu0 %v868
    %v967 = vpop.f32.mrb[0].mxu0
    %v968 = vadd.f32 0.0, %v967
    %v969 = vpop.f32.mrb[0].mxu0
    %970 = vdwg.mxu0
    %v971 = vsel %vm643, %v500, 0
    %v973 = vsel %vm643, %v502, 0
    %v975 = vsel %vm643, %v504, 0
    %v977 = vsel %vm643, %v506, 0
    %v979 = vsel %vm643, %v548, 0
    %v981 = vsel %vm643, %v550, 0
    %v983 = vsel %vm643, %v552, 0
    %v985 = vsel %vm643, %v554, 0
    %v987 = vsel %vm643, %v556, 0
    %v989 = vsel %vm643, %v558, 0
    %v991 = vsel %vm643, %v560, 0
    %v993 = vsel %vm643, %v562, 0
    %995 = vmatprep.subr.mxu0 0.0
    %996 = vmatpush1.xpose.msra.mxu0 %v979
    %997 = vmatprep.subr.mxu0 0.0
    %998 = vmatpush1.xpose.msra.mxu0 %v981
    %999 = vmatprep.subr.mxu0 0.0
    %1000 = vmatpush1.xpose.msra.mxu0 %v983
    %1001 = vmatprep.subr.mxu0 0.0
    %1002 = vmatpush1.xpose.msra.mxu0 %v985
    %1003 = vmatprep.subr.mxu0 0.0
    %1004 = vmatpush1.xpose.msra.mxu0 %v987
    %1005 = vmatprep.subr.mxu0 0.0
    %1006 = vmatpush1.xpose.msra.mxu0 %v989
    %1007 = vmatprep.subr.mxu0 0.0
    %1008 = vmatpush1.xpose.msra.mxu0 %v991
    %1009 = vmatprep.subr.mxu0 0.0
    %1010 = vmatpush1.xpose.msra.mxu0 %v993
    %1011 = vmatprep.subr.mxu0 0.0
    %1012 = vmatpush1.xpose.msra.mxu0 0.0
    %1013 = vmatprep.subr.mxu0 0.0
    %1014 = vmatpush1.xpose.msra.mxu0 0.0
    %1015 = vmatprep.subr.mxu0 0.0
    %1016 = vmatpush1.xpose.msra.mxu0 0.0
    %1017 = vmatprep.subr.mxu0 0.0
    %1018 = vmatpush1.xpose.msra.mxu0 0.0
    %1019 = vmatprep.subr.mxu0 0.0
    %1020 = vmatpush1.xpose.msra.mxu0 0.0
    %1021 = vmatprep.subr.mxu0 0.0
    %1022 = vmatpush1.xpose.msra.mxu0 0.0
    %1023 = vmatprep.subr.mxu0 0.0
    %1024 = vmatpush1.xpose.msra.mxu0 0.0
    %1025 = vmatprep.subr.mxu0 0.0
    %1026 = vmatpush1.xpose.msra.mxu0 0.0
    %1027 = vmatprep.subr.mxu0 0.0
    %1028 = vmatpush1.xpose.msra.mxu0 0.0
    %1029 = vmatprep.subr.mxu0 0.0
    %1030 = vmatpush1.xpose.msra.mxu0 0.0
    %1031 = vmatprep.subr.mxu0 0.0
    %1032 = vmatpush1.xpose.msra.mxu0 0.0
    %1033 = vmatprep.subr.mxu0 0.0
    %1034 = vmatpush1.xpose.msra.mxu0 0.0
    %1035 = vmatprep.subr.mxu0 0.0
    %1036 = vmatpush1.xpose.msra.mxu0 0.0
    %1037 = vmatprep.subr.mxu0 0.0
    %1038 = vmatpush1.xpose.msra.mxu0 0.0
    %1039 = vmatprep.subr.mxu0 0.0
    %1040 = vmatpush1.xpose.msra.mxu0 0.0
    %1041 = vmatprep.subr.mxu0 0.0
    %1042 = vmatpush1.xpose.msra.mxu0 0.0
    %1043 = vmatprep.subr.mxu0 0.0
    %1044 = vmatpush1.xpose.msra.mxu0 0.0
    %1045 = vmatprep.subr.mxu0 0.0
    %1046 = vmatpush1.xpose.msra.mxu0 0.0
    %1047 = vmatprep.subr.mxu0 0.0
    %1048 = vmatpush1.xpose.msra.mxu0 0.0
    %1049 = vmatprep.subr.mxu0 0.0
    %1050 = vmatpush1.xpose.msra.mxu0 0.0
    %1051 = vmatprep.subr.mxu0 0.0
    %1052 = vmatpush1.xpose.msra.mxu0 0.0
    %1053 = vmatprep.subr.mxu0 0.0
    %1054 = vmatpush1.xpose.msra.mxu0 0.0
    %1055 = vmatprep.subr.mxu0 0.0
    %1056 = vmatpush1.xpose.msra.mxu0 0.0
    %1057 = vmatprep.subr.mxu0 0.0
    %1058 = vmatpush1.xpose.msra.mxu0 0.0
    %1059 = vmatprep.mubr.f32.mxu0 0.0
    %1060 = vmatmul.mubr.f32.gmra.mrb[0].mxu0 %v971
    %v1061 = vpop.f32.mrb[0].mxu0
    %v1062 = vadd.f32 0.0, %v1061
    %v1063 = vpop.f32.mrb[0].mxu0
    %1064 = vmatprep.mubr.f32.mxu0 0.0
    %1065 = vmatmul.mubr.f32.gmra.mrb[0].mxu0 %v973
    %v1066 = vpop.f32.mrb[0].mxu0
    %v1067 = vadd.f32 0.0, %v1066
    %v1068 = vpop.f32.mrb[0].mxu0
    %1069 = vmatprep.mubr.f32.mxu0 0.0
    %1070 = vmatmul.mubr.f32.gmra.mrb[0].mxu0 %v975
    %v1071 = vpop.f32.mrb[0].mxu0
    %v1072 = vadd.f32 0.0, %v1071
    %v1073 = vpop.f32.mrb[0].mxu0
    %1074 = vmatprep.mubr.f32.mxu0 0.0
    %1075 = vmatmul.mubr.f32.gmra.mrb[0].mxu0 %v977
    %v1076 = vpop.f32.mrb[0].mxu0
    %v1077 = vadd.f32 0.0, %v1076
    %v1078 = vpop.f32.mrb[0].mxu0
    %1079 = vdwg.mxu0
    %v1080 = vlaneseq
    %v1081 = vshrl.u32 %v1080, 7
    %v1082 = vadd.s32 %v1081, 8
    %v1083 = vadd.s32 %v1081, 16
    %v1084 = vadd.s32 %v1081, 24
    %v1085 = vlaneseq
    %v1086 = vand.u32 %v1085, 127
    %vm1087 = vcmp.lt.s32.totalorder %v1081, 0
    %v1088 = vsub.s32 0, %v1081
    %v1089 = vsel %vm1087, %v1088, %v1081
    %v1090 = vshrl.u32 %v1089, 2
    %v1091 = vand.u32 %v1089, 3
    %v1092 = vsub.s32 0, %v1091
    %v1093 = vsel %vm1087, %v1092, %v1091
    %vm1094 = vcmp.lt.s32.totalorder %v1082, 0
    %v1095 = vsub.s32 0, %v1082
    %v1096 = vsel %vm1094, %v1095, %v1082
    %v1097 = vshrl.u32 %v1096, 2
    %v1098 = vand.u32 %v1096, 3
    %v1099 = vsub.s32 0, %v1098
    %v1100 = vsel %vm1094, %v1099, %v1098
    %vm1101 = vcmp.lt.s32.totalorder %v1083, 0
    %v1102 = vsub.s32 0, %v1083
    %v1103 = vsel %vm1101, %v1102, %v1083
    %v1104 = vshrl.u32 %v1103, 2
    %v1105 = vand.u32 %v1103, 3
    %v1106 = vsub.s32 0, %v1105
    %v1107 = vsel %vm1101, %v1106, %v1105
    %vm1108 = vcmp.lt.s32.totalorder %v1084, 0
    %v1109 = vsub.s32 0, %v1084
    %v1110 = vsel %vm1108, %v1109, %v1084
    %v1111 = vshrl.u32 %v1110, 2
    %v1112 = vand.u32 %v1110, 3
    %v1113 = vsub.s32 0, %v1112
    %v1114 = vsel %vm1108, %v1113, %v1112
    %vm1115 = vcmp.ne.s32.totalorder %v1093, 0
    %vm1116 = vcmp.ne.s32.totalorder %v1100, 0
    %vm1117 = vcmp.ne.s32.totalorder %v1107, 0
    %vm1118 = vcmp.ne.s32.totalorder %v1114, 0
    %vm1119 = vcmp.lt.s32.totalorder %v1093, 0
    %vm1120 = vcmp.lt.s32.totalorder %v1100, 0
    %vm1121 = vcmp.lt.s32.totalorder %v1107, 0
    %vm1122 = vcmp.lt.s32.totalorder %v1114, 0
    %vm1123 = vmand %vm1119, %vm1115
    %vm1124 = vmand %vm1120, %vm1116
    %vm1125 = vmand %vm1121, %vm1117
    %vm1126 = vmand %vm1122, %vm1118
    %v1127 = vadd.s32 %v1093, 4
    %v1128 = vadd.s32 %v1100, 4
    %v1129 = vadd.s32 %v1107, 4
    %v1130 = vadd.s32 %v1114, 4
    %v1131 = vsel %vm1123, %v1127, %v1093
    %v1132 = vsel %vm1124, %v1128, %v1100
    %v1133 = vsel %vm1125, %v1129, %v1107
    %v1134 = vsel %vm1126, %v1130, %v1114
    %vm1135 = vcmp.lt.s32.totalorder %v1086, 0
    %v1136 = vsub.s32 0, %v1086
    %v1137 = vsel %vm1135, %v1136, %v1086
    %v1138 = vshrl.u32 %v1137, 2
    %v1139 = vand.u32 %v1137, 3
    %v1140 = vsub.s32 0, %v1139
    %v1141 = vsel %vm1135, %v1140, %v1139
    %vm1142 = vcmp.ne.s32.totalorder %v1141, 0
    %vm1143 = vcmp.lt.s32.totalorder %v1141, 0
    %vm1144 = vmand %vm1143, %vm1142
    %v1145 = vadd.s32 %v1141, 4
    %v1146 = vsel %vm1144, %v1145, %v1141
    %vm1147 = vcmp.eq.s32.totalorder %v1131, %v1146
    %vm1148 = vcmp.eq.s32.totalorder %v1132, %v1146
    %vm1149 = vcmp.eq.s32.totalorder %v1133, %v1146
    %vm1150 = vcmp.eq.s32.totalorder %v1134, %v1146
    %v1151 = vsel %vm1147, 1, 0
    %v1152 = vsel %vm1148, 1, 0
    %v1153 = vsel %vm1149, 1, 0
    %v1154 = vsel %vm1150, 1, 0
    %vm1155 = vcmp.eq.s32.totalorder %v1151, 1
    %vm1156 = vcmp.eq.s32.totalorder %v1152, 1
    %vm1157 = vcmp.eq.s32.totalorder %v1153, 1
    %vm1158 = vcmp.eq.s32.totalorder %v1154, 1
    %v1159 = vsel %vm1155, %v735, -1e+30
    %v1160 = vsel %vm1156, %v740, -1e+30
    %v1161 = vsel %vm1157, %v745, -1e+30
    %v1162 = vsel %vm1158, %v750, -1e+30
    %v1163 = vsel %vm1155, %v844, -1e+30
    %v1164 = vsel %vm1156, %v849, -1e+30
    %v1165 = vsel %vm1157, %v854, -1e+30
    %v1166 = vsel %vm1158, %v859, -1e+30
    %v1167 = vsel %vm1155, %v953, -1e+30
    %v1168 = vsel %vm1156, %v958, -1e+30
    %v1169 = vsel %vm1157, %v963, -1e+30
    %v1170 = vsel %vm1158, %v968, -1e+30
    %v1171 = vsel %vm1155, %v1062, -1e+30
    %v1172 = vsel %vm1156, %v1067, -1e+30
    %v1173 = vsel %vm1157, %v1072, -1e+30
    %v1174 = vsel %vm1158, %v1077, -1e+30
    %vm1175 = vcmask 523264
    %v1176 = vsel %vm1175, %v1159, -inf
    %1177 = vmax.xlane.f32.xlu0 %v1176
    %v1178 = vpop.xlane.xlu0 %1177
    %v1179 = vsel %vm1175, %v1160, -inf
    %1180 = vmax.xlane.f32.xlu0 %v1179
    %v1181 = vpop.xlane.xlu0 %1180
    %v1182 = vsel %vm1175, %v1161, -inf
    %1183 = vmax.xlane.f32.xlu0 %v1182
    %v1184 = vpop.xlane.xlu0 %1183
    %v1185 = vsel %vm1175, %v1162, -inf
    %1186 = vmax.xlane.f32.xlu0 %v1185
    %v1187 = vpop.xlane.xlu0 %1186
    %v1188 = vsel %vm1175, %v1163, -inf
    %1189 = vmax.xlane.f32.xlu0 %v1188
    %v1190 = vpop.xlane.xlu0 %1189
    %v1191 = vsel %vm1175, %v1164, -inf
    %1192 = vmax.xlane.f32.xlu0 %v1191
    %v1193 = vpop.xlane.xlu0 %1192
    %v1194 = vsel %vm1175, %v1165, -inf
    %1195 = vmax.xlane.f32.xlu0 %v1194
    %v1196 = vpop.xlane.xlu0 %1195
    %v1197 = vsel %vm1175, %v1166, -inf
    %1198 = vmax.xlane.f32.xlu0 %v1197
    %v1199 = vpop.xlane.xlu0 %1198
    %v1200 = vsel %vm1175, %v1167, -inf
    %1201 = vmax.xlane.f32.xlu0 %v1200
    %v1202 = vpop.xlane.xlu0 %1201
    %v1203 = vsel %vm1175, %v1168, -inf
    %1204 = vmax.xlane.f32.xlu0 %v1203
    %v1205 = vpop.xlane.xlu0 %1204
    %v1206 = vsel %vm1175, %v1169, -inf
    %1207 = vmax.xlane.f32.xlu0 %v1206
    %v1208 = vpop.xlane.xlu0 %1207
    %v1209 = vsel %vm1175, %v1170, -inf
    %1210 = vmax.xlane.f32.xlu0 %v1209
    %v1211 = vpop.xlane.xlu0 %1210
    %v1212 = vsel %vm1175, %v1171, -inf
    %1213 = vmax.xlane.f32.xlu0 %v1212
    %v1214 = vpop.xlane.xlu0 %1213
    %v1215 = vsel %vm1175, %v1172, -inf
    %1216 = vmax.xlane.f32.xlu0 %v1215
    %v1217 = vpop.xlane.xlu0 %1216
    %v1218 = vsel %vm1175, %v1173, -inf
    %1219 = vmax.xlane.f32.xlu0 %v1218
    %v1220 = vpop.xlane.xlu0 %1219
    %v1221 = vsel %vm1175, %v1174, -inf
    %1222 = vmax.xlane.f32.xlu0 %v1221
    %v1223 = vpop.xlane.xlu0 %1222
    %v1224 = vsub.f32 %v1159, %v1178
    %v1225 = vsub.f32 %v1160, %v1181
    %v1226 = vsub.f32 %v1161, %v1184
    %v1227 = vsub.f32 %v1162, %v1187
    %v1228 = vsub.f32 %v1163, %v1190
    %v1229 = vsub.f32 %v1164, %v1193
    %v1230 = vsub.f32 %v1165, %v1196
    %v1231 = vsub.f32 %v1166, %v1199
    %v1232 = vsub.f32 %v1167, %v1202
    %v1233 = vsub.f32 %v1168, %v1205
    %v1234 = vsub.f32 %v1169, %v1208
    %v1235 = vsub.f32 %v1170, %v1211
    %v1236 = vsub.f32 %v1171, %v1214
    %v1237 = vsub.f32 %v1172, %v1217
    %v1238 = vsub.f32 %v1173, %v1220
    %v1239 = vsub.f32 %v1174, %v1223
    %v1240 = vmul.f32 %v1224, 1.442695
    %v1241 = vpow.pop %v1240
    %v1242 = vmul.f32 %v1225, 1.442695
    %v1243 = vpow.pop %v1242
    %v1244 = vmul.f32 %v1226, 1.442695
    %v1245 = vpow.pop %v1244
    %v1246 = vmul.f32 %v1227, 1.442695
    %v1247 = vpow.pop %v1246
    %v1248 = vmul.f32 %v1228, 1.442695
    %v1249 = vpow.pop %v1248
    %v1250 = vmul.f32 %v1229, 1.442695
    %v1251 = vpow.pop %v1250
    %v1252 = vmul.f32 %v1230, 1.442695
    %v1253 = vpow.pop %v1252
    %v1254 = vmul.f32 %v1231, 1.442695
    %v1255 = vpow.pop %v1254
    %v1256 = vmul.f32 %v1232, 1.442695
    %v1257 = vpow.pop %v1256
    %v1258 = vmul.f32 %v1233, 1.442695
    %v1259 = vpow.pop %v1258
    %v1260 = vmul.f32 %v1234, 1.442695
    %v1261 = vpow.pop %v1260
    %v1262 = vmul.f32 %v1235, 1.442695
    %v1263 = vpow.pop %v1262
    %v1264 = vmul.f32 %v1236, 1.442695
    %v1265 = vpow.pop %v1264
    %v1266 = vmul.f32 %v1237, 1.442695
    %v1267 = vpow.pop %v1266
    %v1268 = vmul.f32 %v1238, 1.442695
    %v1269 = vpow.pop %v1268
    %v1270 = vmul.f32 %v1239, 1.442695
    %v1271 = vpow.pop %v1270
    %v1272 = vsel %vm1175, %v1241, 0.0
    %1273 = vadd.xlane.f32.xlu0 %v1272
    %v1274 = vpop.xlane.xlu0 %1273
    %v1275 = vsel %vm1175, %v1243, 0.0
    %1276 = vadd.xlane.f32.xlu0 %v1275
    %v1277 = vpop.xlane.xlu0 %1276
    %v1278 = vsel %vm1175, %v1245, 0.0
    %1279 = vadd.xlane.f32.xlu0 %v1278
    %v1280 = vpop.xlane.xlu0 %1279
    %v1281 = vsel %vm1175, %v1247, 0.0
    %1282 = vadd.xlane.f32.xlu0 %v1281
    %v1283 = vpop.xlane.xlu0 %1282
    %v1284 = vsel %vm1175, %v1249, 0.0
    %1285 = vadd.xlane.f32.xlu0 %v1284
    %v1286 = vpop.xlane.xlu0 %1285
    %v1287 = vsel %vm1175, %v1251, 0.0
    %1288 = vadd.xlane.f32.xlu0 %v1287
    %v1289 = vpop.xlane.xlu0 %1288
    %v1290 = vsel %vm1175, %v1253, 0.0
    %1291 = vadd.xlane.f32.xlu0 %v1290
    %v1292 = vpop.xlane.xlu0 %1291
    %v1293 = vsel %vm1175, %v1255, 0.0
    %1294 = vadd.xlane.f32.xlu0 %v1293
    %v1295 = vpop.xlane.xlu0 %1294
    %v1296 = vsel %vm1175, %v1257, 0.0
    %1297 = vadd.xlane.f32.xlu0 %v1296
    %v1298 = vpop.xlane.xlu0 %1297
    %v1299 = vsel %vm1175, %v1259, 0.0
    %1300 = vadd.xlane.f32.xlu0 %v1299
    %v1301 = vpop.xlane.xlu0 %1300
    %v1302 = vsel %vm1175, %v1261, 0.0
    %1303 = vadd.xlane.f32.xlu0 %v1302
    %v1304 = vpop.xlane.xlu0 %1303
    %v1305 = vsel %vm1175, %v1263, 0.0
    %1306 = vadd.xlane.f32.xlu0 %v1305
    %v1307 = vpop.xlane.xlu0 %1306
    %v1308 = vsel %vm1175, %v1265, 0.0
    %1309 = vadd.xlane.f32.xlu0 %v1308
    %v1310 = vpop.xlane.xlu0 %1309
    %v1311 = vsel %vm1175, %v1267, 0.0
    %1312 = vadd.xlane.f32.xlu0 %v1311
    %v1313 = vpop.xlane.xlu0 %1312
    %v1314 = vsel %vm1175, %v1269, 0.0
    %1315 = vadd.xlane.f32.xlu0 %v1314
    %v1316 = vpop.xlane.xlu0 %1315
    %v1317 = vsel %vm1175, %v1271, 0.0
    %1318 = vadd.xlane.f32.xlu0 %v1317
    %v1319 = vpop.xlane.xlu0 %1318
    %v1320 = vrcp.pop %v1274
    %v1321 = vrcp.pop %v1277
    %v1322 = vrcp.pop %v1280
    %v1323 = vrcp.pop %v1283
    %v1324 = vrcp.pop %v1286
    %v1325 = vrcp.pop %v1289
    %v1326 = vrcp.pop %v1292
    %v1327 = vrcp.pop %v1295
    %v1328 = vrcp.pop %v1298
    %v1329 = vrcp.pop %v1301
    %v1330 = vrcp.pop %v1304
    %v1331 = vrcp.pop %v1307
    %v1332 = vrcp.pop %v1310
    %v1333 = vrcp.pop %v1313
    %v1334 = vrcp.pop %v1316
    %v1335 = vrcp.pop %v1319
    %v1336 = vmul.f32 %v1241, %v1320
    %v1337 = vmul.f32 %v1243, %v1321
    %v1338 = vmul.f32 %v1245, %v1322
    %v1339 = vmul.f32 %v1247, %v1323
    %v1340 = vmul.f32 %v1249, %v1324
    %v1341 = vmul.f32 %v1251, %v1325
    %v1342 = vmul.f32 %v1253, %v1326
    %v1343 = vmul.f32 %v1255, %v1327
    %v1344 = vmul.f32 %v1257, %v1328
    %v1345 = vmul.f32 %v1259, %v1329
    %v1346 = vmul.f32 %v1261, %v1330
    %v1347 = vmul.f32 %v1263, %v1331
    %v1348 = vmul.f32 %v1265, %v1332
    %v1349 = vmul.f32 %v1267, %v1333
    %v1350 = vmul.f32 %v1269, %v1334
    %v1351 = vmul.f32 %v1271, %v1335
    %v1353 = vsel %vm1175, %v1336, 0
    %v1356 = vsel %vm1175, %v1337, 0
    %v1359 = vsel %vm1175, %v1338, 0
    %v1362 = vsel %vm1175, %v1339, 0
    %1364 = vmatprep.subr.mxu0 0.0
    %1365 = vmatpush1.msra.mxu0 %v441
    %1366 = vmatprep.subr.mxu0 0.0
    %1367 = vmatpush1.msra.mxu0 %v446
    %1368 = vmatprep.subr.mxu0 0.0
    %1369 = vmatpush1.msra.mxu0 %v451
    %1370 = vmatprep.subr.mxu0 0.0
    %1371 = vmatpush1.msra.mxu0 %v456
    %1372 = vmatprep.subr.mxu0 0.0
    %1373 = vmatpush1.msra.mxu0 %v461
    %1374 = vmatprep.subr.mxu0 0.0
    %1375 = vmatpush1.msra.mxu0 %v466
    %1376 = vmatprep.subr.mxu0 0.0
    %1377 = vmatpush1.msra.mxu0 %v471
    %1378 = vmatprep.subr.mxu0 0.0
    %1379 = vmatpush1.msra.mxu0 %v476
    %1380 = vmatprep.subr.mxu0 0.0
    %1381 = vmatpush1.msra.mxu0 0.0
    %1382 = vmatprep.subr.mxu0 0.0
    %1383 = vmatpush1.msra.mxu0 0.0
    %1384 = vmatprep.subr.mxu0 0.0
    %1385 = vmatpush1.msra.mxu0 0.0
    %1386 = vmatprep.subr.mxu0 0.0
    %1387 = vmatpush1.msra.mxu0 0.0
    %1388 = vmatprep.subr.mxu0 0.0
    %1389 = vmatpush1.msra.mxu0 0.0
    %1390 = vmatprep.subr.mxu0 0.0
    %1391 = vmatpush1.msra.mxu0 0.0
    %1392 = vmatprep.subr.mxu0 0.0
    %1393 = vmatpush1.msra.mxu0 0.0
    %1394 = vmatprep.subr.mxu0 0.0
    %1395 = vmatpush1.msra.mxu0 0.0
    %1396 = vmatprep.subr.mxu0 0.0
    %1397 = vmatpush1.msra.mxu0 0.0
    %1398 = vmatprep.subr.mxu0 0.0
    %1399 = vmatpush1.msra.mxu0 0.0
    %1400 = vmatprep.subr.mxu0 0.0
    %1401 = vmatpush1.msra.mxu0 0.0
    %1402 = vmatprep.subr.mxu0 0.0
    %1403 = vmatpush1.msra.mxu0 0.0
    %1404 = vmatprep.subr.mxu0 0.0
    %1405 = vmatpush1.msra.mxu0 0.0
    %1406 = vmatprep.subr.mxu0 0.0
    %1407 = vmatpush1.msra.mxu0 0.0
    %1408 = vmatprep.subr.mxu0 0.0
    %1409 = vmatpush1.msra.mxu0 0.0
    %1410 = vmatprep.subr.mxu0 0.0
    %1411 = vmatpush1.msra.mxu0 0.0
    %1412 = vmatprep.subr.mxu0 0.0
    %1413 = vmatpush1.msra.mxu0 0.0
    %1414 = vmatprep.subr.mxu0 0.0
    %1415 = vmatpush1.msra.mxu0 0.0
    %1416 = vmatprep.subr.mxu0 0.0
    %1417 = vmatpush1.msra.mxu0 0.0
    %1418 = vmatprep.subr.mxu0 0.0
    %1419 = vmatpush1.msra.mxu0 0.0
    %1420 = vmatprep.subr.mxu0 0.0
    %1421 = vmatpush1.msra.mxu0 0.0
    %1422 = vmatprep.subr.mxu0 0.0
    %1423 = vmatpush1.msra.mxu0 0.0
    %1424 = vmatprep.subr.mxu0 0.0
    %1425 = vmatpush1.msra.mxu0 0.0
    %1426 = vmatprep.subr.mxu0 0.0
    %1427 = vmatpush1.msra.mxu0 0.0
    %1428 = vmatprep.mubr.f32.mxu0 0.0
    %1429 = vmatmul.mubr.f32.gmra.mrb[0].mxu0 %v1353
    %v1430 = vpop.f32.mrb[0].mxu0
    %v1431 = vadd.f32 0.0, %v1430
    %v1432 = vpop.f32.mrb[0].mxu0
    %1433 = vmatprep.mubr.f32.mxu0 0.0
    %1434 = vmatmul.mubr.f32.gmra.mrb[0].mxu0 %v1356
    %v1435 = vpop.f32.mrb[0].mxu0
    %v1436 = vadd.f32 0.0, %v1435
    %v1437 = vpop.f32.mrb[0].mxu0
    %1438 = vmatprep.mubr.f32.mxu0 0.0
    %1439 = vmatmul.mubr.f32.gmra.mrb[0].mxu0 %v1359
    %v1440 = vpop.f32.mrb[0].mxu0
    %v1441 = vadd.f32 0.0, %v1440
    %v1442 = vpop.f32.mrb[0].mxu0
    %1443 = vmatprep.mubr.f32.mxu0 0.0
    %1444 = vmatmul.mubr.f32.gmra.mrb[0].mxu0 %v1362
    %v1445 = vpop.f32.mrb[0].mxu0
    %v1446 = vadd.f32 0.0, %v1445
    %v1447 = vpop.f32.mrb[0].mxu0
    %1448 = vdwg.mxu0
    %v1450 = vsel %vm1175, %v1340, 0
    %v1453 = vsel %vm1175, %v1341, 0
    %v1456 = vsel %vm1175, %v1342, 0
    %v1459 = vsel %vm1175, %v1343, 0
    %1461 = vmatprep.subr.mxu0 0.0
    %1462 = vmatpush1.msra.mxu0 %v572
    %1463 = vmatprep.subr.mxu0 0.0
    %1464 = vmatpush1.msra.mxu0 %v574
    %1465 = vmatprep.subr.mxu0 0.0
    %1466 = vmatpush1.msra.mxu0 %v576
    %1467 = vmatprep.subr.mxu0 0.0
    %1468 = vmatpush1.msra.mxu0 %v578
    %1469 = vmatprep.subr.mxu0 0.0
    %1470 = vmatpush1.msra.mxu0 %v580
    %1471 = vmatprep.subr.mxu0 0.0
    %1472 = vmatpush1.msra.mxu0 %v582
    %1473 = vmatprep.subr.mxu0 0.0
    %1474 = vmatpush1.msra.mxu0 %v584
    %1475 = vmatprep.subr.mxu0 0.0
    %1476 = vmatpush1.msra.mxu0 %v586
    %1477 = vmatprep.subr.mxu0 0.0
    %1478 = vmatpush1.msra.mxu0 0.0
    %1479 = vmatprep.subr.mxu0 0.0
    %1480 = vmatpush1.msra.mxu0 0.0
    %1481 = vmatprep.subr.mxu0 0.0
    %1482 = vmatpush1.msra.mxu0 0.0
    %1483 = vmatprep.subr.mxu0 0.0
    %1484 = vmatpush1.msra.mxu0 0.0
    %1485 = vmatprep.subr.mxu0 0.0
    %1486 = vmatpush1.msra.mxu0 0.0
    %1487 = vmatprep.subr.mxu0 0.0
    %1488 = vmatpush1.msra.mxu0 0.0
    %1489 = vmatprep.subr.mxu0 0.0
    %1490 = vmatpush1.msra.mxu0 0.0
    %1491 = vmatprep.subr.mxu0 0.0
    %1492 = vmatpush1.msra.mxu0 0.0
    %1493 = vmatprep.subr.mxu0 0.0
    %1494 = vmatpush1.msra.mxu0 0.0
    %1495 = vmatprep.subr.mxu0 0.0
    %1496 = vmatpush1.msra.mxu0 0.0
    %1497 = vmatprep.subr.mxu0 0.0
    %1498 = vmatpush1.msra.mxu0 0.0
    %1499 = vmatprep.subr.mxu0 0.0
    %1500 = vmatpush1.msra.mxu0 0.0
    %1501 = vmatprep.subr.mxu0 0.0
    %1502 = vmatpush1.msra.mxu0 0.0
    %1503 = vmatprep.subr.mxu0 0.0
    %1504 = vmatpush1.msra.mxu0 0.0
    %1505 = vmatprep.subr.mxu0 0.0
    %1506 = vmatpush1.msra.mxu0 0.0
    %1507 = vmatprep.subr.mxu0 0.0
    %1508 = vmatpush1.msra.mxu0 0.0
    %1509 = vmatprep.subr.mxu0 0.0
    %1510 = vmatpush1.msra.mxu0 0.0
    %1511 = vmatprep.subr.mxu0 0.0
    %1512 = vmatpush1.msra.mxu0 0.0
    %1513 = vmatprep.subr.mxu0 0.0
    %1514 = vmatpush1.msra.mxu0 0.0
    %1515 = vmatprep.subr.mxu0 0.0
    %1516 = vmatpush1.msra.mxu0 0.0
    %1517 = vmatprep.subr.mxu0 0.0
    %1518 = vmatpush1.msra.mxu0 0.0
    %1519 = vmatprep.subr.mxu0 0.0
    %1520 = vmatpush1.msra.mxu0 0.0
    %1521 = vmatprep.subr.mxu0 0.0
    %1522 = vmatpush1.msra.mxu0 0.0
    %1523 = vmatprep.subr.mxu0 0.0
    %1524 = vmatpush1.msra.mxu0 0.0
    %1525 = vmatprep.mubr.f32.mxu0 0.0
    %1526 = vmatmul.mubr.f32.gmra.mrb[0].mxu0 %v1450
    %v1527 = vpop.f32.mrb[0].mxu0
    %v1528 = vadd.f32 0.0, %v1527
    %v1529 = vpop.f32.mrb[0].mxu0
    %1530 = vmatprep.mubr.f32.mxu0 0.0
    %1531 = vmatmul.mubr.f32.gmra.mrb[0].mxu0 %v1453
    %v1532 = vpop.f32.mrb[0].mxu0
    %v1533 = vadd.f32 0.0, %v1532
    %v1534 = vpop.f32.mrb[0].mxu0
    %1535 = vmatprep.mubr.f32.mxu0 0.0
    %1536 = vmatmul.mubr.f32.gmra.mrb[0].mxu0 %v1456
    %v1537 = vpop.f32.mrb[0].mxu0
    %v1538 = vadd.f32 0.0, %v1537
    %v1539 = vpop.f32.mrb[0].mxu0
    %1540 = vmatprep.mubr.f32.mxu0 0.0
    %1541 = vmatmul.mubr.f32.gmra.mrb[0].mxu0 %v1459
    %v1542 = vpop.f32.mrb[0].mxu0
    %v1543 = vadd.f32 0.0, %v1542
    %v1544 = vpop.f32.mrb[0].mxu0
    %1545 = vdwg.mxu0
    %v1547 = vsel %vm1175, %v1344, 0
    %v1550 = vsel %vm1175, %v1345, 0
    %v1553 = vsel %vm1175, %v1346, 0
    %v1556 = vsel %vm1175, %v1347, 0
    %1558 = vmatprep.subr.mxu0 0.0
    %1559 = vmatpush1.msra.mxu0 %v596
    %1560 = vmatprep.subr.mxu0 0.0
    %1561 = vmatpush1.msra.mxu0 %v598
    %1562 = vmatprep.subr.mxu0 0.0
    %1563 = vmatpush1.msra.mxu0 %v600
    %1564 = vmatprep.subr.mxu0 0.0
    %1565 = vmatpush1.msra.mxu0 %v602
    %1566 = vmatprep.subr.mxu0 0.0
    %1567 = vmatpush1.msra.mxu0 %v604
    %1568 = vmatprep.subr.mxu0 0.0
    %1569 = vmatpush1.msra.mxu0 %v606
    %1570 = vmatprep.subr.mxu0 0.0
    %1571 = vmatpush1.msra.mxu0 %v608
    %1572 = vmatprep.subr.mxu0 0.0
    %1573 = vmatpush1.msra.mxu0 %v610
    %1574 = vmatprep.subr.mxu0 0.0
    %1575 = vmatpush1.msra.mxu0 0.0
    %1576 = vmatprep.subr.mxu0 0.0
    %1577 = vmatpush1.msra.mxu0 0.0
    %1578 = vmatprep.subr.mxu0 0.0
    %1579 = vmatpush1.msra.mxu0 0.0
    %1580 = vmatprep.subr.mxu0 0.0
    %1581 = vmatpush1.msra.mxu0 0.0
    %1582 = vmatprep.subr.mxu0 0.0
    %1583 = vmatpush1.msra.mxu0 0.0
    %1584 = vmatprep.subr.mxu0 0.0
    %1585 = vmatpush1.msra.mxu0 0.0
    %1586 = vmatprep.subr.mxu0 0.0
    %1587 = vmatpush1.msra.mxu0 0.0
    %1588 = vmatprep.subr.mxu0 0.0
    %1589 = vmatpush1.msra.mxu0 0.0
    %1590 = vmatprep.subr.mxu0 0.0
    %1591 = vmatpush1.msra.mxu0 0.0
    %1592 = vmatprep.subr.mxu0 0.0
    %1593 = vmatpush1.msra.mxu0 0.0
    %1594 = vmatprep.subr.mxu0 0.0
    %1595 = vmatpush1.msra.mxu0 0.0
    %1596 = vmatprep.subr.mxu0 0.0
    %1597 = vmatpush1.msra.mxu0 0.0
    %1598 = vmatprep.subr.mxu0 0.0
    %1599 = vmatpush1.msra.mxu0 0.0
    %1600 = vmatprep.subr.mxu0 0.0
    %1601 = vmatpush1.msra.mxu0 0.0
    %1602 = vmatprep.subr.mxu0 0.0
    %1603 = vmatpush1.msra.mxu0 0.0
    %1604 = vmatprep.subr.mxu0 0.0
    %1605 = vmatpush1.msra.mxu0 0.0
    %1606 = vmatprep.subr.mxu0 0.0
    %1607 = vmatpush1.msra.mxu0 0.0
    %1608 = vmatprep.subr.mxu0 0.0
    %1609 = vmatpush1.msra.mxu0 0.0
    %1610 = vmatprep.subr.mxu0 0.0
    %1611 = vmatpush1.msra.mxu0 0.0
    %1612 = vmatprep.subr.mxu0 0.0
    %1613 = vmatpush1.msra.mxu0 0.0
    %1614 = vmatprep.subr.mxu0 0.0
    %1615 = vmatpush1.msra.mxu0 0.0
    %1616 = vmatprep.subr.mxu0 0.0
    %1617 = vmatpush1.msra.mxu0 0.0
    %1618 = vmatprep.subr.mxu0 0.0
    %1619 = vmatpush1.msra.mxu0 0.0
    %1620 = vmatprep.subr.mxu0 0.0
    %1621 = vmatpush1.msra.mxu0 0.0
    %1622 = vmatprep.mubr.f32.mxu0 0.0
    %1623 = vmatmul.mubr.f32.gmra.mrb[0].mxu0 %v1547
    %v1624 = vpop.f32.mrb[0].mxu0
    %v1625 = vadd.f32 0.0, %v1624
    %v1626 = vpop.f32.mrb[0].mxu0
    %1627 = vmatprep.mubr.f32.mxu0 0.0
    %1628 = vmatmul.mubr.f32.gmra.mrb[0].mxu0 %v1550
    %v1629 = vpop.f32.mrb[0].mxu0
    %v1630 = vadd.f32 0.0, %v1629
    %v1631 = vpop.f32.mrb[0].mxu0
    %1632 = vmatprep.mubr.f32.mxu0 0.0
    %1633 = vmatmul.mubr.f32.gmra.mrb[0].mxu0 %v1553
    %v1634 = vpop.f32.mrb[0].mxu0
    %v1635 = vadd.f32 0.0, %v1634
    %v1636 = vpop.f32.mrb[0].mxu0
    %1637 = vmatprep.mubr.f32.mxu0 0.0
    %1638 = vmatmul.mubr.f32.gmra.mrb[0].mxu0 %v1556
    %v1639 = vpop.f32.mrb[0].mxu0
    %v1640 = vadd.f32 0.0, %v1639
    %v1641 = vpop.f32.mrb[0].mxu0
    %1642 = vdwg.mxu0
    %v1644 = vsel %vm1175, %v1348, 0
    %v1647 = vsel %vm1175, %v1349, 0
    %v1650 = vsel %vm1175, %v1350, 0
    %v1653 = vsel %vm1175, %v1351, 0
    %1655 = vmatprep.subr.mxu0 0.0
    %1656 = vmatpush1.msra.mxu0 %v620
    %1657 = vmatprep.subr.mxu0 0.0
    %1658 = vmatpush1.msra.mxu0 %v622
    %1659 = vmatprep.subr.mxu0 0.0
    %1660 = vmatpush1.msra.mxu0 %v624
    %1661 = vmatprep.subr.mxu0 0.0
    %1662 = vmatpush1.msra.mxu0 %v626
    %1663 = vmatprep.subr.mxu0 0.0
    %1664 = vmatpush1.msra.mxu0 %v628
    %1665 = vmatprep.subr.mxu0 0.0
    %1666 = vmatpush1.msra.mxu0 %v630
    %1667 = vmatprep.subr.mxu0 0.0
    %1668 = vmatpush1.msra.mxu0 %v632
    %1669 = vmatprep.subr.mxu0 0.0
    %1670 = vmatpush1.msra.mxu0 %v634
    %1671 = vmatprep.subr.mxu0 0.0
    %1672 = vmatpush1.msra.mxu0 0.0
    %1673 = vmatprep.subr.mxu0 0.0
    %1674 = vmatpush1.msra.mxu0 0.0
    %1675 = vmatprep.subr.mxu0 0.0
    %1676 = vmatpush1.msra.mxu0 0.0
    %1677 = vmatprep.subr.mxu0 0.0
    %1678 = vmatpush1.msra.mxu0 0.0
    %1679 = vmatprep.subr.mxu0 0.0
    %1680 = vmatpush1.msra.mxu0 0.0
    %1681 = vmatprep.subr.mxu0 0.0
    %1682 = vmatpush1.msra.mxu0 0.0
    %1683 = vmatprep.subr.mxu0 0.0
    %1684 = vmatpush1.msra.mxu0 0.0
    %1685 = vmatprep.subr.mxu0 0.0
    %1686 = vmatpush1.msra.mxu0 0.0
    %1687 = vmatprep.subr.mxu0 0.0
    %1688 = vmatpush1.msra.mxu0 0.0
    %1689 = vmatprep.subr.mxu0 0.0
    %1690 = vmatpush1.msra.mxu0 0.0
    %1691 = vmatprep.subr.mxu0 0.0
    %1692 = vmatpush1.msra.mxu0 0.0
    %1693 = vmatprep.subr.mxu0 0.0
    %1694 = vmatpush1.msra.mxu0 0.0
    %1695 = vmatprep.subr.mxu0 0.0
    %1696 = vmatpush1.msra.mxu0 0.0
    %1697 = vmatprep.subr.mxu0 0.0
    %1698 = vmatpush1.msra.mxu0 0.0
    %1699 = vmatprep.subr.mxu0 0.0
    %1700 = vmatpush1.msra.mxu0 0.0
    %1701 = vmatprep.subr.mxu0 0.0
    %1702 = vmatpush1.msra.mxu0 0.0
    %1703 = vmatprep.subr.mxu0 0.0
    %1704 = vmatpush1.msra.mxu0 0.0
    %1705 = vmatprep.subr.mxu0 0.0
    %1706 = vmatpush1.msra.mxu0 0.0
    %1707 = vmatprep.subr.mxu0 0.0
    %1708 = vmatpush1.msra.mxu0 0.0
    %1709 = vmatprep.subr.mxu0 0.0
    %1710 = vmatpush1.msra.mxu0 0.0
    %1711 = vmatprep.subr.mxu0 0.0
    %1712 = vmatpush1.msra.mxu0 0.0
    %1713 = vmatprep.subr.mxu0 0.0
    %1714 = vmatpush1.msra.mxu0 0.0
    %1715 = vmatprep.subr.mxu0 0.0
    %1716 = vmatpush1.msra.mxu0 0.0
    %1717 = vmatprep.subr.mxu0 0.0
    %1718 = vmatpush1.msra.mxu0 0.0
    %1719 = vmatprep.mubr.f32.mxu0 0.0
    %1720 = vmatmul.mubr.f32.gmra.mrb[0].mxu0 %v1644
    %v1721 = vpop.f32.mrb[0].mxu0
    %v1722 = vadd.f32 0.0, %v1721
    %v1723 = vpop.f32.mrb[0].mxu0
    %1724 = vmatprep.mubr.f32.mxu0 0.0
    %1725 = vmatmul.mubr.f32.gmra.mrb[0].mxu0 %v1647
    %v1726 = vpop.f32.mrb[0].mxu0
    %v1727 = vadd.f32 0.0, %v1726
    %v1728 = vpop.f32.mrb[0].mxu0
    %1729 = vmatprep.mubr.f32.mxu0 0.0
    %1730 = vmatmul.mubr.f32.gmra.mrb[0].mxu0 %v1650
    %v1731 = vpop.f32.mrb[0].mxu0
    %v1732 = vadd.f32 0.0, %v1731
    %v1733 = vpop.f32.mrb[0].mxu0
    %1734 = vmatprep.mubr.f32.mxu0 0.0
    %1735 = vmatmul.mubr.f32.gmra.mrb[0].mxu0 %v1653
    %v1736 = vpop.f32.mrb[0].mxu0
    %v1737 = vadd.f32 0.0, %v1736
    %v1738 = vpop.f32.mrb[0].mxu0
    %1739 = vdwg.mxu0
    %1744 = vrot.lane.b32.xlu0 %v1528, 8
    %v1745 = vpop.permute.xlu0 %1744
    %1746 = vrot.lane.b32.xlu0 %v1533, 8
    %v1747 = vpop.permute.xlu0 %1746
    %1748 = vrot.lane.b32.xlu0 %v1538, 8
    %v1749 = vpop.permute.xlu0 %1748
    %1750 = vrot.lane.b32.xlu0 %v1543, 8
    %v1751 = vpop.permute.xlu0 %1750
    %1760 = vrot.lane.b32.xlu0 %v1625, 16
    %v1761 = vpop.permute.xlu0 %1760
    %1762 = vrot.lane.b32.xlu0 %v1630, 16
    %v1763 = vpop.permute.xlu0 %1762
    %1764 = vrot.lane.b32.xlu0 %v1635, 16
    %v1765 = vpop.permute.xlu0 %1764
    %1766 = vrot.lane.b32.xlu0 %v1640, 16
    %v1767 = vpop.permute.xlu0 %1766
    %1776 = vrot.lane.b32.xlu0 %v1722, 24
    %v1777 = vpop.permute.xlu0 %1776
    %1778 = vrot.lane.b32.xlu0 %v1727, 24
    %v1779 = vpop.permute.xlu0 %1778
    %1780 = vrot.lane.b32.xlu0 %v1732, 24
    %v1781 = vpop.permute.xlu0 %1780
    %1782 = vrot.lane.b32.xlu0 %v1737, 24
    %v1783 = vpop.permute.xlu0 %1782
    %v1788 = vsel %vm643, %v1431, %v1745
    %v1789 = vsel %vm643, %v1436, %v1747
    %v1790 = vsel %vm643, %v1441, %v1749
    %v1791 = vsel %vm643, %v1446, %v1751
    %vm1792 = vcmask 130048
    %v1793 = vsel %vm1792, %v1788, %v1761
    %v1794 = vsel %vm1792, %v1789, %v1763
    %v1795 = vsel %vm1792, %v1790, %v1765
    %v1796 = vsel %vm1792, %v1791, %v1767
    %vm1797 = vcmask 195584
    %v1798 = vsel %vm1797, %v1793, %v1777
    %v1799 = vsel %vm1797, %v1794, %v1779
    %v1800 = vsel %vm1797, %v1795, %v1781
    %v1801 = vsel %vm1797, %v1796, %v1783
    %v1802 = vld [vmem:[#allocation2] sm:$0xff]
    %v1803 = vld [vmem:[#allocation2 + $0x8] sm:$0xff]
    %v1804 = vld [vmem:[#allocation2 + $0x10] sm:$0xff]
    %v1805 = vld [vmem:[#allocation2 + $0x18] sm:$0xff]
    %v1806 = vld [vmem:[%s7] sm:$0x1]
    %v1808 = vlaneseq
    %v1809 = vshrl.u32 %v1808, 7
    %v1810 = vsub.s32 0, %v1809
    %v1811 = vrot.slane %v1806, %v1810
    %v1814 = vsel %vm97, %v1798, 0
    %v1817 = vsel %vm97, %v1799, 0
    %v1820 = vsel %vm97, %v1800, 0
    %v1823 = vsel %vm97, %v1801, 0
    %1825 = vmatprep.subr.mxu0 0.0
    %1826 = vmatpush1.msra.mxu0 %v1802
    %1827 = vmatprep.subr.mxu0 0.0
    %1828 = vmatpush1.msra.mxu0 %v1803
    %1829 = vmatprep.subr.mxu0 0.0
    %1830 = vmatpush1.msra.mxu0 %v1804
    %1831 = vmatprep.subr.mxu0 0.0
    %1832 = vmatpush1.msra.mxu0 %v1805
    %1833 = vmatprep.subr.mxu0 0.0
    %1834 = vmatpush1.msra.mxu0 0.0
    %1835 = vmatprep.subr.mxu0 0.0
    %1836 = vmatpush1.msra.mxu0 0.0
    %1837 = vmatprep.subr.mxu0 0.0
    %1838 = vmatpush1.msra.mxu0 0.0
    %1839 = vmatprep.subr.mxu0 0.0
    %1840 = vmatpush1.msra.mxu0 0.0
    %1841 = vmatprep.subr.mxu0 0.0
    %1842 = vmatpush1.msra.mxu0 0.0
    %1843 = vmatprep.subr.mxu0 0.0
    %1844 = vmatpush1.msra.mxu0 0.0
    %1845 = vmatprep.subr.mxu0 0.0
    %1846 = vmatpush1.msra.mxu0 0.0
    %1847 = vmatprep.subr.mxu0 0.0
    %1848 = vmatpush1.msra.mxu0 0.0
    %1849 = vmatprep.subr.mxu0 0.0
    %1850 = vmatpush1.msra.mxu0 0.0
    %1851 = vmatprep.subr.mxu0 0.0
    %1852 = vmatpush1.msra.mxu0 0.0
    %1853 = vmatprep.subr.mxu0 0.0
    %1854 = vmatpush1.msra.mxu0 0.0
    %1855 = vmatprep.subr.mxu0 0.0
    %1856 = vmatpush1.msra.mxu0 0.0
    %1857 = vmatprep.subr.mxu0 0.0
    %1858 = vmatpush1.msra.mxu0 0.0
    %1859 = vmatprep.subr.mxu0 0.0
    %1860 = vmatpush1.msra.mxu0 0.0
    %1861 = vmatprep.subr.mxu0 0.0
    %1862 = vmatpush1.msra.mxu0 0.0
    %1863 = vmatprep.subr.mxu0 0.0
    %1864 = vmatpush1.msra.mxu0 0.0
    %1865 = vmatprep.subr.mxu0 0.0
    %1866 = vmatpush1.msra.mxu0 0.0
    %1867 = vmatprep.subr.mxu0 0.0
    %1868 = vmatpush1.msra.mxu0 0.0
    %1869 = vmatprep.subr.mxu0 0.0
    %1870 = vmatpush1.msra.mxu0 0.0
    %1871 = vmatprep.subr.mxu0 0.0
    %1872 = vmatpush1.msra.mxu0 0.0
    %1873 = vmatprep.subr.mxu0 0.0
    %1874 = vmatpush1.msra.mxu0 0.0
    %1875 = vmatprep.subr.mxu0 0.0
    %1876 = vmatpush1.msra.mxu0 0.0
    %1877 = vmatprep.subr.mxu0 0.0
    %1878 = vmatpush1.msra.mxu0 0.0
    %1879 = vmatprep.subr.mxu0 0.0
    %1880 = vmatpush1.msra.mxu0 0.0
    %1881 = vmatprep.subr.mxu0 0.0
    %1882 = vmatpush1.msra.mxu0 0.0
    %1883 = vmatprep.subr.mxu0 0.0
    %1884 = vmatpush1.msra.mxu0 0.0
    %1885 = vmatprep.subr.mxu0 0.0
    %1886 = vmatpush1.msra.mxu0 0.0
    %1887 = vmatprep.subr.mxu0 0.0
    %1888 = vmatpush1.msra.mxu0 0.0
    %1889 = vmatprep.mubr.f32.mxu0 0.0
    %1890 = vmatmul.mubr.f32.gmra.mrb[0].mxu0 %v1814
    %v1891 = vpop.f32.mrb[0].mxu0
    %v1892 = vadd.f32 %v1811, %v1891
    %v1893 = vpop.f32.mrb[0].mxu0
    %1894 = vmatprep.mubr.f32.mxu0 0.0
    %1895 = vmatmul.mubr.f32.gmra.mrb[0].mxu0 %v1817
    %v1896 = vpop.f32.mrb[0].mxu0
    %v1897 = vadd.f32 %v1811, %v1896
    %v1898 = vpop.f32.mrb[0].mxu0
    %1899 = vmatprep.mubr.f32.mxu0 0.0
    %1900 = vmatmul.mubr.f32.gmra.mrb[0].mxu0 %v1820
    %v1901 = vpop.f32.mrb[0].mxu0
    %v1902 = vadd.f32 %v1811, %v1901
    %v1903 = vpop.f32.mrb[0].mxu0
    %1904 = vmatprep.mubr.f32.mxu0 0.0
    %1905 = vmatmul.mubr.f32.gmra.mrb[0].mxu0 %v1823
    %v1906 = vpop.f32.mrb[0].mxu0
    %v1907 = vadd.f32 %v1811, %v1906
    %v1908 = vpop.f32.mrb[0].mxu0
    %1909 = vdwg.mxu0
    %v1910 = vadd.f32 %v50, %v1892
    %v1911 = vadd.f32 %v51, %v1897
    %v1912 = vadd.f32 %v52, %v1902
    %v1913 = vadd.f32 %v53, %v1907
    %v1914 = vsel %vm97, %v1910, 0.0
    %1915 = vadd.xlane.f32.xlu0 %v1914
    %v1916 = vpop.xlane.xlu0 %1915
    %v1917 = vsel %vm97, %v1911, 0.0
    %1918 = vadd.xlane.f32.xlu0 %v1917
    %v1919 = vpop.xlane.xlu0 %1918
    %v1920 = vsel %vm97, %v1912, 0.0
    %1921 = vadd.xlane.f32.xlu0 %v1920
    %v1922 = vpop.xlane.xlu0 %1921
    %v1923 = vsel %vm97, %v1913, 0.0
    %1924 = vadd.xlane.f32.xlu0 %v1923
    %v1925 = vpop.xlane.xlu0 %1924
    %v1926 = vrcp.pop 32.0
    %v1927 = vmul.f32 %v1916, %v1926
    %v1928 = vmul.f32 %v1919, %v1926
    %v1929 = vmul.f32 %v1922, %v1926
    %v1930 = vmul.f32 %v1925, %v1926
    %v1931 = vsub.f32 %v1910, %v1927
    %v1932 = vsub.f32 %v1911, %v1928
    %v1933 = vsub.f32 %v1912, %v1929
    %v1934 = vsub.f32 %v1913, %v1930
    %v1935 = vmul.f32 %v1931, %v1931
    %v1936 = vmul.f32 %v1932, %v1932
    %v1937 = vmul.f32 %v1933, %v1933
    %v1938 = vmul.f32 %v1934, %v1934
    %v1939 = vsel %vm97, %v1935, 0.0
    %1940 = vadd.xlane.f32.xlu0 %v1939
    %v1941 = vpop.xlane.xlu0 %1940
    %v1942 = vsel %vm97, %v1936, 0.0
    %1943 = vadd.xlane.f32.xlu0 %v1942
    %v1944 = vpop.xlane.xlu0 %1943
    %v1945 = vsel %vm97, %v1937, 0.0
    %1946 = vadd.xlane.f32.xlu0 %v1945
    %v1947 = vpop.xlane.xlu0 %1946
    %v1948 = vsel %vm97, %v1938, 0.0
    %1949 = vadd.xlane.f32.xlu0 %v1948
    %v1950 = vpop.xlane.xlu0 %1949
    %v1951 = vmul.f32 %v1941, %v1926
    %v1952 = vmul.f32 %v1944, %v1926
    %v1953 = vmul.f32 %v1947, %v1926
    %v1954 = vmul.f32 %v1950, %v1926
    %v1955 = vadd.f32 %v1951, 1e-05
    %v1956 = vadd.f32 %v1952, 1e-05
    %v1957 = vadd.f32 %v1953, 1e-05
    %v1958 = vadd.f32 %v1954, 1e-05
    %v1959 = vrsqrt.pop %v1955
    %v1960 = vrsqrt.pop %v1956
    %v1961 = vrsqrt.pop %v1957
    %v1962 = vrsqrt.pop %v1958
    %v1963 = vmul.f32 %v1931, %v1959
    %v1964 = vmul.f32 %v1932, %v1960
    %v1965 = vmul.f32 %v1933, %v1961
    %v1966 = vmul.f32 %v1934, %v1962
    %v1967 = vld [vmem:[%s8] sm:$0x1]
    %v1969 = vlaneseq
    %v1970 = vshrl.u32 %v1969, 7
    %v1971 = vsub.s32 0, %v1970
    %v1972 = vrot.slane %v1967, %v1971
    %v1974 = vmul.f32 %v1963, %v1972
    %v1975 = vmul.f32 %v1964, %v1972
    %v1976 = vmul.f32 %v1965, %v1972
    %v1977 = vmul.f32 %v1966, %v1972
    %v1978 = vld [vmem:[%s9] sm:$0x1]
    %v1980 = vlaneseq
    %v1981 = vshrl.u32 %v1980, 7
    %v1982 = vsub.s32 0, %v1981
    %v1983 = vrot.slane %v1978, %v1982
    %v1985 = vadd.f32 %v1974, %v1983
    %v1986 = vadd.f32 %v1975, %v1983
    %v1987 = vadd.f32 %v1976, %v1983
    %v1988 = vadd.f32 %v1977, %v1983
    %1989 = vst.msk [vmem:[#allocation5] sm:$0xff] %vm97, %v1985
    %1990 = vst.msk [vmem:[#allocation5 + $0x8] sm:$0xff] %vm97, %v1986
    %1991 = vst.msk [vmem:[#allocation5 + $0x10] sm:$0xff] %vm97, %v1987
    %1992 = vst.msk [vmem:[#allocation5 + $0x18] sm:$0xff] %vm97, %v1988
    // Predicated region
    $region46: #{tpu_custom_call.1} parent=1 // pred_check
      _
    $region47: #{tpu_custom_call.1} parent=1 // pred_check_branch
      %1994 = sbr.rel (0) target = $region49
    $region48: #{tpu_custom_call.1} parent=1 // pred_region
      %s1996 = ssub.s32 512, 512
      %1997 = vsyncadd [#allocation4], %s1996
      %s1998 = sshll.u32 [#allocation5], 4
      %s1999 = int_to_ptr.vmem [resolvable:$true] %s1998
      %2004 = dma.vmem_to_hbm [thread:$0]  %s1999, 512, %s10, [#allocation4], 128, 128, 8
    $region49: #{tpu_custom_call.1} parent=1 // pred_fallthru
      _
    // Predicated region
    $region50: #{tpu_custom_call.1} parent=1 // pred_check
      _
    $region51: #{tpu_custom_call.1} parent=1 // pred_check_branch
      %2006 = sbr.rel (0) target = $region53
    $region52: #{tpu_custom_call.1} parent=1 // pred_region
      %2007 = dma.done [#allocation4], 512
    $region53: #{tpu_custom_call.1} parent=1 // pred_fallthru
      _
    %2008 = vsyncpa [#allocation3], 1
    %2009 = vsyncpa [#allocation4], 1

</llo_original>
